<compile_context>
chip_gen: v6e
topology: v6e:2x2x1
jax: 0.10.0
libtpu: 0.0.40
codegen_flags: <defaults>
</compile_context>

<pallas_src>
import jax
import jax.numpy as jnp
import numpy as np
from jax.experimental import pallas as pl
from jax.experimental.pallas import tpu as pltpu

KH, KW, C_OUT = 17, 64, 5      # conv kernel height / width, out channels
PAD_H = 8                      # conv height padding
N_OUT = 2                      # final logits
OUT_PAD = 128                  # lane-dense padded output width


def _round_up(x, m):
    return (x + m - 1) // m * m


def _pick_th(h):
    """Chunk height for the banded-conv matmul (even, divides h, <= 32)."""
    for cand in (32, 16, 8, 4, 2):
        if h > cand and h % cand == 0:
            return cand
    return h   # single chunk: only edge windows, always lane aligned


def _make_kernel(h, th):
    nj = h // th

    def kernel(x_ref, wband_ref, bconv_ref, pool_ref,
               w1_ref, b1_ref, w2_ref, b2_ref, out_ref):
        # x_ref:     (TB, H*64)          one flattened (H,64) sample per row
        # wband_ref: ((TH+16)*64, TH*5)  banded, shift-invariant conv weight
        # bconv_ref: (1, TH*5)           conv bias tiled over TH output rows
        # pool_ref:  (TH*5, 5)           per-chunk avg-pool matrix (has 1/H)
        # w1_ref:    (5, 5)   b1_ref: (1, 5)
        # w2_ref:    (5, 128) b2_ref: (1, 128)   zero-padded to 128 lanes
        # out_ref:   (TB, 128)
        tb = x_ref.shape[0]
        pooled = jnp.zeros((tb, C_OUT), dtype=jnp.float32)
        for j in range(nj):                         # static, small (<= H/TH)
            r_lo = max(j * th - PAD_H, 0)           # first valid input row
            r_hi = min((j + 1) * th + PAD_H, h)     # one past last valid row
            w_lo = r_lo - (j * th - PAD_H)          # matching banded-weight row
            xw = x_ref[:, r_lo * KW: r_hi * KW]                    # lane aligned
            ww = wband_ref[w_lo * KW: (w_lo + r_hi - r_lo) * KW, :]
            conv = jnp.dot(xw, ww, preferred_element_type=jnp.float32)
            relu = jnp.maximum(conv + bconv_ref[...], 0.0)
            pooled = pooled + jnp.dot(relu, pool_ref[...],
                                      preferred_element_type=jnp.float32)
        fc1 = jnp.dot(pooled, w1_ref[...],
                      preferred_element_type=jnp.float32) + b1_ref[...]
        sig = 1.0 / (1.0 + jnp.exp(-fc1))           # sigmoid (EUP exp, f32)
        out_ref[...] = jnp.dot(sig, w2_ref[...],
                               preferred_element_type=jnp.float32) + b2_ref[...]

    return kernel


def prepare_params(torch_params, win_len):
    """Convert PyTorch-layout parameters into the kernel layouts."""
    wconv_pt, bconv, w1_pt, b1, w2_pt, b2 = [
        np.asarray(p, np.float32) for p in torch_params]
    th = _pick_th(win_len)

    # Banded weight: column block t (conv output row t of the chunk) holds
    # W[kh] at row block rel_r = t + kh -> conv_chunk = x_window @ wband.
    wk = np.transpose(wconv_pt[:, 0, :, :], (1, 2, 0))        # (KH, KW, C_OUT)
    wband = np.zeros(((th + 2 * PAD_H) * KW, th * C_OUT), np.float32)
    for t in range(th):
        for kh in range(KH):
            rr = t + kh
            wband[rr * KW:(rr + 1) * KW, t * C_OUT:(t + 1) * C_OUT] = wk[kh]

    bconv_tile = np.tile(bconv.reshape(1, C_OUT), (1, th))     # (1, TH*5)

    pool = np.zeros((th * C_OUT, C_OUT), np.float32)           # relu -> mean
    for t in range(th):
        pool[t * C_OUT:(t + 1) * C_OUT, :] = np.eye(C_OUT, dtype=np.float32) / win_len

    w2_pad = np.zeros((C_OUT, OUT_PAD), np.float32)            # lane-dense out
    w2_pad[:, :N_OUT] = w2_pt.T
    b2_pad = np.zeros((1, OUT_PAD), np.float32)
    b2_pad[0, :N_OUT] = b2

    arrays = (wband, bconv_tile, pool, w1_pt.T,
              b1.reshape(1, C_OUT), w2_pad, b2_pad)
    return (th, win_len) + tuple(jnp.asarray(a) for a in arrays)


def cnn_baseline_forward(x, env0, env1, params):
    """x: (B, win_len, 64) float32. env0/env1 are unused (matches PyTorch)."""
    del env0, env1
    th, win_len, wband, bconv_tile, pool, w1t, b1, w2_pad, b2_pad = params
    B, H, W = x.shape
    assert W == KW, "conv kernel width is 64, so input width must be 64"
    assert H == win_len, "avg-pool assumes input height == win_len"
    assert H % th == 0

    # Fold as many samples per grid step as fits comfortably in VMEM
    # (x block is double-buffered); TB is a multiple of 8 (sublanes).
    row_bytes = H * KW * 4
    tb_cap = max(8, ((8 << 20) // (2 * row_bytes)) // 8 * 8)
    tb_max = int(min(64, tb_cap))
    n_steps = max(1, -(-B // tb_max))
    TB = min(tb_max, _round_up(-(-B // n_steps), 8))
    B_pad = _round_up(B, TB)

    x2 = x.reshape(B, H * KW)                     # contiguous, no copy of note
    if B_pad != B:
        x2 = jnp.pad(x2, ((0, B_pad - B), (0, 0)))

    kernel = _make_kernel(H, th)
    out = pl.pallas_call(
        kernel,
        out_shape=jax.ShapeDtypeStruct((B_pad, OUT_PAD), jnp.float32),
        grid_spec=pltpu.PrefetchScalarGridSpec(
            num_scalar_prefetch=0,
            grid=(B_pad // TB,),
            in_specs=[
                pl.BlockSpec((TB, H * KW), lambda b: (b, 0)),
                pl.BlockSpec(wband.shape, lambda b: (0, 0)),
                pl.BlockSpec(bconv_tile.shape, lambda b: (0, 0)),
                pl.BlockSpec(pool.shape, lambda b: (0, 0)),
                pl.BlockSpec(w1t.shape, lambda b: (0, 0)),
                pl.BlockSpec(b1.shape, lambda b: (0, 0)),
                pl.BlockSpec(w2_pad.shape, lambda b: (0, 0)),
                pl.BlockSpec(b2_pad.shape, lambda b: (0, 0)),
            ],
            out_specs=pl.BlockSpec((TB, OUT_PAD), lambda b: (b, 0)),
        ),
        compiler_params=pltpu.CompilerParams(
            dimension_semantics=("parallel",),
            vmem_limit_bytes=32 * 1024 * 1024,
        ),
    )(x2, wband, bconv_tile, pool, w1t, b1, w2_pad, b2_pad)
    return out[:B, :N_OUT]


def reference_forward(x, torch_params):
    """Pure-JAX reference using PyTorch-layout parameters."""
    wconv_pt, bconv, w1_pt, b1, w2_pt, b2 = torch_params
    hi = jax.lax.Precision.HIGHEST
    conv = jax.lax.conv_general_dilated(
        x[:, None, :, :], wconv_pt, window_strides=(1, 1),
        padding=((PAD_H, PAD_H), (0, 0)),
        dimension_numbers=("NCHW", "OIHW", "NCHW"),
        precision=hi) + bconv[None, :, None, None]            # (B,5,H,1)
    relu = jnp.maximum(conv, 0.0)
    pooled = jnp.mean(relu, axis=2)[:, :, 0]                   # (B,5)
    fc1 = jnp.dot(pooled, w1_pt.T, precision=hi) + b1
    sig = jax.nn.sigmoid(fc1)
    fc2 = jnp.dot(sig, w2_pt.T, precision=hi) + b2
    return fc2


if __name__ == "__main__":
    B, WIN_LEN = 22, 48        # small; width must be 64 (conv kernel width)
    key = jax.random.PRNGKey(0)
    kx, kw0, kb0, kw1, kb1, kw2, kb2 = jax.random.split(key, 7)

    x = jax.random.normal(kx, (B, WIN_LEN, KW), jnp.float32)
    env0 = jnp.zeros((B,), jnp.float32)   # unused by forward
    env1 = jnp.zeros((B,), jnp.float32)   # unused by forward

    # Deterministic parameter init (PyTorch layouts)
    wconv_pt = jax.random.normal(kw0, (C_OUT, 1, KH, KW), jnp.float32) * 0.05
    bconv = jax.random.normal(kb0, (C_OUT,), jnp.float32) * 0.05
    w1_pt = jax.random.normal(kw1, (C_OUT, C_OUT), jnp.float32) * 0.3
    b1 = jax.random.normal(kb1, (C_OUT,), jnp.float32) * 0.1
    w2_pt = jax.random.normal(kw2, (N_OUT, C_OUT), jnp.float32) * 0.3
    b2 = jax.random.normal(kb2, (N_OUT,), jnp.float32) * 0.1

    kernel_params = prepare_params(
        (wconv_pt, bconv, w1_pt, b1, w2_pt, b2), WIN_LEN)

    out = cnn_baseline_forward(x, env0, env1, kernel_params)
    out = jax.block_until_ready(out)

    ref = reference_forward(x, (wconv_pt, bconv, w1_pt, b1, w2_pt, b2))
    assert out.shape == (B, N_OUT)
    np.testing.assert_allclose(np.asarray(out), np.asarray(ref),
                               rtol=2e-3, atol=2e-3)
    print("KERNEL_OK")
</pallas_src>

<mosaic_0001>
module attributes {stable_mosaic.version = 11 : i64} {
  func.func @kernel(%arg0: i32, %arg1: memref<24x3072xf32, #tpu.memory_space<vmem>>, %arg2: memref<2048x80xf32, #tpu.memory_space<vmem>>, %arg3: memref<1x80xf32, #tpu.memory_space<vmem>>, %arg4: memref<80x5xf32, #tpu.memory_space<vmem>>, %arg5: memref<5x5xf32, #tpu.memory_space<vmem>>, %arg6: memref<1x5xf32, #tpu.memory_space<vmem>>, %arg7: memref<5x128xf32, #tpu.memory_space<vmem>>, %arg8: memref<1x128xf32, #tpu.memory_space<vmem>>, %arg9: memref<24x128xf32, #tpu.memory_space<vmem>>) attributes {dimension_semantics = [#tpu.dimension_semantics<parallel>], iteration_bounds = array<i64: 1>, scalar_prefetch = 0 : i64, scratch_operands = 0 : i64, tpu.core_type = #tpu.core_type<tc>, window_params = [{transform_indices = @transform_0, window_bounds = array<i64: 24, 3072>}, {pipeline_mode = #tpu.pipeline_mode<synchronous>, transform_indices = @transform_1, window_bounds = array<i64: 2048, 80>}, {pipeline_mode = #tpu.pipeline_mode<synchronous>, transform_indices = @transform_2, window_bounds = array<i64: 1, 80>}, {pipeline_mode = #tpu.pipeline_mode<synchronous>, transform_indices = @transform_3, window_bounds = array<i64: 80, 5>}, {pipeline_mode = #tpu.pipeline_mode<synchronous>, transform_indices = @transform_4, window_bounds = array<i64: 5, 5>}, {pipeline_mode = #tpu.pipeline_mode<synchronous>, transform_indices = @transform_5, window_bounds = array<i64: 1, 5>}, {pipeline_mode = #tpu.pipeline_mode<synchronous>, transform_indices = @transform_6, window_bounds = array<i64: 5, 128>}, {pipeline_mode = #tpu.pipeline_mode<synchronous>, transform_indices = @transform_7, window_bounds = array<i64: 1, 128>}, {transform_indices = @transform_8, window_bounds = array<i64: 24, 128>}]} {
    %cst = arith.constant 0.000000e+00 : f32
    %0 = vector.broadcast %cst : f32 to vector<24x5xf32>
    %c0 = arith.constant 0 : index
    %c0_0 = arith.constant 0 : index
    %1 = vector.load %arg1[%c0, %c0_0] : memref<24x3072xf32, #tpu.memory_space<vmem>>, vector<24x1536xf32>
    %c512 = arith.constant 512 : index
    %c0_1 = arith.constant 0 : index
    %2 = vector.load %arg2[%c512, %c0_1] : memref<2048x80xf32, #tpu.memory_space<vmem>>, vector<1536x80xf32>
    %cst_2 = arith.constant dense<0.000000e+00> : vector<24x80xf32>
    %3 = tpu.matmul %1, %2, %cst_2 {dimension_numbers = #tpu.dot_dimension_numbers<[1], [0], [0], [1], [0, 0, 1, 1], [], []>} : vector<24x1536xf32>, vector<1536x80xf32>, vector<24x80xf32> -> vector<24x80xf32>
    %c0_3 = arith.constant 0 : index
    %c0_4 = arith.constant 0 : index
    %4 = vector.load %arg3[%c0_3, %c0_4] : memref<1x80xf32, #tpu.memory_space<vmem>>, vector<1x80xf32>
    %5 = vector.broadcast %4 : vector<1x80xf32> to vector<24x80xf32>
    %6 = arith.addf %3, %5 : vector<24x80xf32>
    %cst_5 = arith.constant 0.000000e+00 : f32
    %7 = vector.broadcast %cst_5 : f32 to vector<24x80xf32>
    %8 = arith.maximumf %6, %7 : vector<24x80xf32>
    %c0_6 = arith.constant 0 : index
    %c0_7 = arith.constant 0 : index
    %9 = vector.load %arg4[%c0_6, %c0_7] : memref<80x5xf32, #tpu.memory_space<vmem>>, vector<80x5xf32>
    %cst_8 = arith.constant dense<0.000000e+00> : vector<24x5xf32>
    %10 = tpu.matmul %8, %9, %cst_8 {dimension_numbers = #tpu.dot_dimension_numbers<[1], [0], [0], [1], [0, 0, 1, 1], [], []>} : vector<24x80xf32>, vector<80x5xf32>, vector<24x5xf32> -> vector<24x5xf32>
    %11 = arith.addf %0, %10 : vector<24x5xf32>
    %c0_9 = arith.constant 0 : index
    %c512_10 = arith.constant 512 : index
    %12 = vector.load %arg1[%c0_9, %c512_10] : memref<24x3072xf32, #tpu.memory_space<vmem>>, vector<24x2048xf32>
    %c0_11 = arith.constant 0 : index
    %c0_12 = arith.constant 0 : index
    %13 = vector.load %arg2[%c0_11, %c0_12] : memref<2048x80xf32, #tpu.memory_space<vmem>>, vector<2048x80xf32>
    %cst_13 = arith.constant dense<0.000000e+00> : vector<24x80xf32>
    %14 = tpu.matmul %12, %13, %cst_13 {dimension_numbers = #tpu.dot_dimension_numbers<[1], [0], [0], [1], [0, 0, 1, 1], [], []>} : vector<24x2048xf32>, vector<2048x80xf32>, vector<24x80xf32> -> vector<24x80xf32>
    %c0_14 = arith.constant 0 : index
    %c0_15 = arith.constant 0 : index
    %15 = vector.load %arg3[%c0_14, %c0_15] : memref<1x80xf32, #tpu.memory_space<vmem>>, vector<1x80xf32>
    %16 = vector.broadcast %15 : vector<1x80xf32> to vector<24x80xf32>
    %17 = arith.addf %14, %16 : vector<24x80xf32>
    %cst_16 = arith.constant 0.000000e+00 : f32
    %18 = vector.broadcast %cst_16 : f32 to vector<24x80xf32>
    %19 = arith.maximumf %17, %18 : vector<24x80xf32>
    %c0_17 = arith.constant 0 : index
    %c0_18 = arith.constant 0 : index
    %20 = vector.load %arg4[%c0_17, %c0_18] : memref<80x5xf32, #tpu.memory_space<vmem>>, vector<80x5xf32>
    %cst_19 = arith.constant dense<0.000000e+00> : vector<24x5xf32>
    %21 = tpu.matmul %19, %20, %cst_19 {dimension_numbers = #tpu.dot_dimension_numbers<[1], [0], [0], [1], [0, 0, 1, 1], [], []>} : vector<24x80xf32>, vector<80x5xf32>, vector<24x5xf32> -> vector<24x5xf32>
    %22 = arith.addf %11, %21 : vector<24x5xf32>
    %c0_20 = arith.constant 0 : index
    %c1536 = arith.constant 1536 : index
    %23 = vector.load %arg1[%c0_20, %c1536] : memref<24x3072xf32, #tpu.memory_space<vmem>>, vector<24x1536xf32>
    %c0_21 = arith.constant 0 : index
    %c0_22 = arith.constant 0 : index
    %24 = vector.load %arg2[%c0_21, %c0_22] : memref<2048x80xf32, #tpu.memory_space<vmem>>, vector<1536x80xf32>
    %cst_23 = arith.constant dense<0.000000e+00> : vector<24x80xf32>
    %25 = tpu.matmul %23, %24, %cst_23 {dimension_numbers = #tpu.dot_dimension_numbers<[1], [0], [0], [1], [0, 0, 1, 1], [], []>} : vector<24x1536xf32>, vector<1536x80xf32>, vector<24x80xf32> -> vector<24x80xf32>
    %c0_24 = arith.constant 0 : index
    %c0_25 = arith.constant 0 : index
    %26 = vector.load %arg3[%c0_24, %c0_25] : memref<1x80xf32, #tpu.memory_space<vmem>>, vector<1x80xf32>
    %27 = vector.broadcast %26 : vector<1x80xf32> to vector<24x80xf32>
    %28 = arith.addf %25, %27 : vector<24x80xf32>
    %cst_26 = arith.constant 0.000000e+00 : f32
    %29 = vector.broadcast %cst_26 : f32 to vector<24x80xf32>
    %30 = arith.maximumf %28, %29 : vector<24x80xf32>
    %c0_27 = arith.constant 0 : index
    %c0_28 = arith.constant 0 : index
    %31 = vector.load %arg4[%c0_27, %c0_28] : memref<80x5xf32, #tpu.memory_space<vmem>>, vector<80x5xf32>
    %cst_29 = arith.constant dense<0.000000e+00> : vector<24x5xf32>
    %32 = tpu.matmul %30, %31, %cst_29 {dimension_numbers = #tpu.dot_dimension_numbers<[1], [0], [0], [1], [0, 0, 1, 1], [], []>} : vector<24x80xf32>, vector<80x5xf32>, vector<24x5xf32> -> vector<24x5xf32>
    %33 = arith.addf %22, %32 : vector<24x5xf32>
    %c0_30 = arith.constant 0 : index
    %c0_31 = arith.constant 0 : index
    %34 = vector.load %arg5[%c0_30, %c0_31] : memref<5x5xf32, #tpu.memory_space<vmem>>, vector<5x5xf32>
    %cst_32 = arith.constant dense<0.000000e+00> : vector<24x5xf32>
    %35 = tpu.matmul %33, %34, %cst_32 {dimension_numbers = #tpu.dot_dimension_numbers<[1], [0], [0], [1], [0, 0, 1, 1], [], []>} : vector<24x5xf32>, vector<5x5xf32>, vector<24x5xf32> -> vector<24x5xf32>
    %c0_33 = arith.constant 0 : index
    %c0_34 = arith.constant 0 : index
    %36 = vector.load %arg6[%c0_33, %c0_34] : memref<1x5xf32, #tpu.memory_space<vmem>>, vector<1x5xf32>
    %37 = vector.broadcast %36 : vector<1x5xf32> to vector<24x5xf32>
    %38 = arith.addf %35, %37 : vector<24x5xf32>
    %cst_35 = arith.constant 0.000000e+00 : f32
    %39 = vector.broadcast %cst_35 : f32 to vector<24x5xf32>
    %40 = arith.subf %39, %38 : vector<24x5xf32>
    %41 = math.exp %40 : vector<24x5xf32>
    %cst_36 = arith.constant 1.000000e+00 : f32
    %42 = vector.broadcast %cst_36 : f32 to vector<24x5xf32>
    %43 = arith.addf %42, %41 : vector<24x5xf32>
    %cst_37 = arith.constant 1.000000e+00 : f32
    %44 = vector.broadcast %cst_37 : f32 to vector<24x5xf32>
    %45 = arith.divf %44, %43 : vector<24x5xf32>
    %c0_38 = arith.constant 0 : index
    %c0_39 = arith.constant 0 : index
    %46 = vector.load %arg7[%c0_38, %c0_39] : memref<5x128xf32, #tpu.memory_space<vmem>>, vector<5x128xf32>
    %cst_40 = arith.constant dense<0.000000e+00> : vector<24x128xf32>
    %47 = tpu.matmul %45, %46, %cst_40 {dimension_numbers = #tpu.dot_dimension_numbers<[1], [0], [0], [1], [0, 0, 1, 1], [], []>} : vector<24x5xf32>, vector<5x128xf32>, vector<24x128xf32> -> vector<24x128xf32>
    %c0_41 = arith.constant 0 : index
    %c0_42 = arith.constant 0 : index
    %48 = vector.load %arg8[%c0_41, %c0_42] : memref<1x128xf32, #tpu.memory_space<vmem>>, vector<1x128xf32>
    %49 = vector.broadcast %48 : vector<1x128xf32> to vector<24x128xf32>
    %50 = arith.addf %47, %49 : vector<24x128xf32>
    %c0_43 = arith.constant 0 : index
    %c0_44 = arith.constant 0 : index
    %51 = vector.load %arg9[%c0_43, %c0_44] : memref<24x128xf32, #tpu.memory_space<vmem>>, vector<24x128xf32>
    tpu.vector_store %arg9[%c0_43, %c0_44], %50 {strides = array<i32>} : memref<24x128xf32, #tpu.memory_space<vmem>>, vector<24x128xf32>,
    return
  }
  func.func @transform_0(%arg0: i32) -> (i32, i32) {
    %c0_i32 = arith.constant 0 : i32
    %c0_i32_0 = arith.constant 0 : i32
    return %arg0, %c0_i32 : i32, i32
  }
  func.func @transform_1(%arg0: i32) -> (i32, i32) {
    %c0_i32 = arith.constant 0 : i32
    %c0_i32_0 = arith.constant 0 : i32
    %c0_i32_1 = arith.constant 0 : i32
    return %c0_i32, %c0_i32_0 : i32, i32
  }
  func.func @transform_2(%arg0: i32) -> (i32, i32) {
    %c0_i32 = arith.constant 0 : i32
    %c0_i32_0 = arith.constant 0 : i32
    %c0_i32_1 = arith.constant 0 : i32
    return %c0_i32, %c0_i32_0 : i32, i32
  }
  func.func @transform_3(%arg0: i32) -> (i32, i32) {
    %c0_i32 = arith.constant 0 : i32
    %c0_i32_0 = arith.constant 0 : i32
    %c0_i32_1 = arith.constant 0 : i32
    return %c0_i32, %c0_i32_0 : i32, i32
  }
  func.func @transform_4(%arg0: i32) -> (i32, i32) {
    %c0_i32 = arith.constant 0 : i32
    %c0_i32_0 = arith.constant 0 : i32
    %c0_i32_1 = arith.constant 0 : i32
    return %c0_i32, %c0_i32_0 : i32, i32
  }
  func.func @transform_5(%arg0: i32) -> (i32, i32) {
    %c0_i32 = arith.constant 0 : i32
    %c0_i32_0 = arith.constant 0 : i32
    %c0_i32_1 = arith.constant 0 : i32
    return %c0_i32, %c0_i32_0 : i32, i32
  }
  func.func @transform_6(%arg0: i32) -> (i32, i32) {
    %c0_i32 = arith.constant 0 : i32
    %c0_i32_0 = arith.constant 0 : i32
    %c0_i32_1 = arith.constant 0 : i32
    return %c0_i32, %c0_i32_0 : i32, i32
  }
  func.func @transform_7(%arg0: i32) -> (i32, i32) {
    %c0_i32 = arith.constant 0 : i32
    %c0_i32_0 = arith.constant 0 : i32
    %c0_i32_1 = arith.constant 0 : i32
    return %c0_i32, %c0_i32_0 : i32, i32
  }
  func.func @transform_8(%arg0: i32) -> (i32, i32) {
    %c0_i32 = arith.constant 0 : i32
    %c0_i32_0 = arith.constant 0 : i32
    return %arg0, %c0_i32 : i32, i32
  }
}

</mosaic_0001>

<llo_original>
// kernel: tpu_custom_call.1
$region0: #{tpu_custom_call.1}
  #allocation0 [shape = 'u32[]', space=smem, size = 0x4, offset = 0x4, fixed_abs, tag = 'smem constant byte address 0x4 - core index']
  #allocation1 [shape = 'u32[144,128]{1,0:T(1,128)}', space=vmem, size = 0x12000, scoped, tag = 'internal scratch']
  %s0 = inlined_call_operand.vmem [shape: f32[24,3072], index: 0, kind: input, shape index: {}]
  %s1 = inlined_call_operand.vmem [shape: f32[2048,80], index: 1, kind: input, shape index: {}]
  %s2 = inlined_call_operand.vmem [shape: f32[1,80], index: 2, kind: input, shape index: {}]
  %s3 = inlined_call_operand.vmem [shape: f32[80,5], index: 3, kind: input, shape index: {}]
  %s4 = inlined_call_operand.vmem [shape: f32[5,5], index: 4, kind: input, shape index: {}]
  %s5 = inlined_call_operand.vmem [shape: f32[1,5], index: 5, kind: input, shape index: {}]
  %s6 = inlined_call_operand.vmem [shape: f32[5,128], index: 6, kind: input, shape index: {}]
  %s7 = inlined_call_operand.vmem [shape: f32[1,128], index: 7, kind: input, shape index: {}]
  %s8 = inlined_call_operand.hbm [shape: f32[24,128], index: 8, kind: output, shape index: {}]
  %s9 = sld [smem:[#allocation0]]
  $region42: #{tpu_custom_call.1} parent=0
    _
  %s11 = ssub.s32 1, %s9
  %s12 = scalar_select 0, %s11, %s9
  $region1: #{tpu_custom_call.1} parent=0
    #allocation2 [shape = 'u8[12288]{0}', space=vmem, size = 0x3000, scoped, tag = 'output window, operand 0, single buffered']
    #allocation3 [shape = 's32[1]{0}', space=sflag, size = 0x4, scoped, tag = 'scoped memory for tpu_custom_call.1']
    %13 = vsyncpa [#allocation3], 0
    // Predicated region
    $region2: #{tpu_custom_call.1} parent=1 // pred_check
      _
    $region3: #{tpu_custom_call.1} parent=1 // pred_check_branch
      %15 = sbr.rel (0) target = $region5
    $region4: #{tpu_custom_call.1} parent=1 // pred_region
      _
    $region5: #{tpu_custom_call.1} parent=1 // pred_fallthru
      _
    // Predicated region
    $region6: #{tpu_custom_call.1} parent=1 // pred_check
      _
    $region7: #{tpu_custom_call.1} parent=1 // pred_check_branch
      %17 = sbr.rel (0) target = $region9
    $region8: #{tpu_custom_call.1} parent=1 // pred_region
      _
    $region9: #{tpu_custom_call.1} parent=1 // pred_fallthru
      _
    // Predicated region
    $region10: #{tpu_custom_call.1} parent=1 // pred_check
      _
    $region11: #{tpu_custom_call.1} parent=1 // pred_check_branch
      %19 = sbr.rel (0) target = $region13
    $region12: #{tpu_custom_call.1} parent=1 // pred_region
      _
    $region13: #{tpu_custom_call.1} parent=1 // pred_fallthru
      _
    // Predicated region
    $region14: #{tpu_custom_call.1} parent=1 // pred_check
      _
    $region15: #{tpu_custom_call.1} parent=1 // pred_check_branch
      %21 = sbr.rel (0) target = $region17
    $region16: #{tpu_custom_call.1} parent=1 // pred_region
      _
    $region17: #{tpu_custom_call.1} parent=1 // pred_fallthru
      _
    // Predicated region
    $region18: #{tpu_custom_call.1} parent=1 // pred_check
      _
    $region19: #{tpu_custom_call.1} parent=1 // pred_check_branch
      %23 = sbr.rel (0) target = $region21
    $region20: #{tpu_custom_call.1} parent=1 // pred_region
      _
    $region21: #{tpu_custom_call.1} parent=1 // pred_fallthru
      _
    // Predicated region
    $region22: #{tpu_custom_call.1} parent=1 // pred_check
      _
    $region23: #{tpu_custom_call.1} parent=1 // pred_check_branch
      %25 = sbr.rel (0) target = $region25
    $region24: #{tpu_custom_call.1} parent=1 // pred_region
      _
    $region25: #{tpu_custom_call.1} parent=1 // pred_fallthru
      _
    // Predicated region
    $region26: #{tpu_custom_call.1} parent=1 // pred_check
      _
    $region27: #{tpu_custom_call.1} parent=1 // pred_check_branch
      %27 = sbr.rel (0) target = $region29
    $region28: #{tpu_custom_call.1} parent=1 // pred_region
      _
    $region29: #{tpu_custom_call.1} parent=1 // pred_fallthru
      _
    // Predicated region
    $region30: #{tpu_custom_call.1} parent=1 // pred_check
      _
    $region31: #{tpu_custom_call.1} parent=1 // pred_check_branch
      %29 = sbr.rel (0) target = $region33
    $region32: #{tpu_custom_call.1} parent=1 // pred_region
      _
    $region33: #{tpu_custom_call.1} parent=1 // pred_fallthru
      _
    %v30 = vld [vmem:[%s0] sm:$0xff]
    %v31 = vld [vmem:[%s0 + $0x8] sm:$0xff]
    %v32 = vld [vmem:[%s0 + $0x10] sm:$0xff]
    %v33 = vld [vmem:[%s0 + $0x18] sm:$0xff]
    %v34 = vld [vmem:[%s0 + $0x20] sm:$0xff]
    %v35 = vld [vmem:[%s0 + $0x28] sm:$0xff]
    %v36 = vld [vmem:[%s0 + $0x30] sm:$0xff]
    %v37 = vld [vmem:[%s0 + $0x38] sm:$0xff]
    %v38 = vld [vmem:[%s0 + $0x40] sm:$0xff]
    %v39 = vld [vmem:[%s0 + $0x48] sm:$0xff]
    %v40 = vld [vmem:[%s0 + $0x50] sm:$0xff]
    %v41 = vld [vmem:[%s0 + $0x58] sm:$0xff]
    %v42 = vld [vmem:[%s0 + $0xc0] sm:$0xff]
    %v43 = vld [vmem:[%s0 + $0xc8] sm:$0xff]
    %v44 = vld [vmem:[%s0 + $0xd0] sm:$0xff]
    %v45 = vld [vmem:[%s0 + $0xd8] sm:$0xff]
    %v46 = vld [vmem:[%s0 + $0xe0] sm:$0xff]
    %v47 = vld [vmem:[%s0 + $0xe8] sm:$0xff]
    %v48 = vld [vmem:[%s0 + $0xf0] sm:$0xff]
    %v49 = vld [vmem:[%s0 + $0xf8] sm:$0xff]
    %v50 = vld [vmem:[%s0 + $0x100] sm:$0xff]
    %v51 = vld [vmem:[%s0 + $0x108] sm:$0xff]
    %v52 = vld [vmem:[%s0 + $0x110] sm:$0xff]
    %v53 = vld [vmem:[%s0 + $0x118] sm:$0xff]
    %v54 = vld [vmem:[%s0 + $0x180] sm:$0xff]
    %v55 = vld [vmem:[%s0 + $0x188] sm:$0xff]
    %v56 = vld [vmem:[%s0 + $0x190] sm:$0xff]
    %v57 = vld [vmem:[%s0 + $0x198] sm:$0xff]
    %v58 = vld [vmem:[%s0 + $0x1a0] sm:$0xff]
    %v59 = vld [vmem:[%s0 + $0x1a8] sm:$0xff]
    %v60 = vld [vmem:[%s0 + $0x1b0] sm:$0xff]
    %v61 = vld [vmem:[%s0 + $0x1b8] sm:$0xff]
    %v62 = vld [vmem:[%s0 + $0x1c0] sm:$0xff]
    %v63 = vld [vmem:[%s0 + $0x1c8] sm:$0xff]
    %v64 = vld [vmem:[%s0 + $0x1d0] sm:$0xff]
    %v65 = vld [vmem:[%s0 + $0x1d8] sm:$0xff]
    %v66 = vld [vmem:[%s1 + $0x200] sm:$0xff]
    %v67 = vld [vmem:[%s1 + $0x208] sm:$0xff]
    %v68 = vld [vmem:[%s1 + $0x210] sm:$0xff]
    %v69 = vld [vmem:[%s1 + $0x218] sm:$0xff]
    %v70 = vld [vmem:[%s1 + $0x220] sm:$0xff]
    %v71 = vld [vmem:[%s1 + $0x228] sm:$0xff]
    %v72 = vld [vmem:[%s1 + $0x230] sm:$0xff]
    %v73 = vld [vmem:[%s1 + $0x238] sm:$0xff]
    %v74 = vld [vmem:[%s1 + $0x240] sm:$0xff]
    %v75 = vld [vmem:[%s1 + $0x248] sm:$0xff]
    %v76 = vld [vmem:[%s1 + $0x250] sm:$0xff]
    %v77 = vld [vmem:[%s1 + $0x258] sm:$0xff]
    %v78 = vld [vmem:[%s1 + $0x260] sm:$0xff]
    %v79 = vld [vmem:[%s1 + $0x268] sm:$0xff]
    %v80 = vld [vmem:[%s1 + $0x270] sm:$0xff]
    %v81 = vld [vmem:[%s1 + $0x278] sm:$0xff]
    %v82 = vld [vmem:[%s1 + $0x280] sm:$0xff]
    %v83 = vld [vmem:[%s1 + $0x288] sm:$0xff]
    %v84 = vld [vmem:[%s1 + $0x290] sm:$0xff]
    %v85 = vld [vmem:[%s1 + $0x298] sm:$0xff]
    %v86 = vld [vmem:[%s1 + $0x2a0] sm:$0xff]
    %v87 = vld [vmem:[%s1 + $0x2a8] sm:$0xff]
    %v88 = vld [vmem:[%s1 + $0x2b0] sm:$0xff]
    %v89 = vld [vmem:[%s1 + $0x2b8] sm:$0xff]
    %v90 = vld [vmem:[%s1 + $0x2c0] sm:$0xff]
    %v91 = vld [vmem:[%s1 + $0x2c8] sm:$0xff]
    %v92 = vld [vmem:[%s1 + $0x2d0] sm:$0xff]
    %v93 = vld [vmem:[%s1 + $0x2d8] sm:$0xff]
    %v94 = vld [vmem:[%s1 + $0x2e0] sm:$0xff]
    %v95 = vld [vmem:[%s1 + $0x2e8] sm:$0xff]
    %v96 = vld [vmem:[%s1 + $0x2f0] sm:$0xff]
    %v97 = vld [vmem:[%s1 + $0x2f8] sm:$0xff]
    %v98 = vld [vmem:[%s1 + $0x300] sm:$0xff]
    %v99 = vld [vmem:[%s1 + $0x308] sm:$0xff]
    %v100 = vld [vmem:[%s1 + $0x310] sm:$0xff]
    %v101 = vld [vmem:[%s1 + $0x318] sm:$0xff]
    %v102 = vld [vmem:[%s1 + $0x320] sm:$0xff]
    %v103 = vld [vmem:[%s1 + $0x328] sm:$0xff]
    %v104 = vld [vmem:[%s1 + $0x330] sm:$0xff]
    %v105 = vld [vmem:[%s1 + $0x338] sm:$0xff]
    %v106 = vld [vmem:[%s1 + $0x340] sm:$0xff]
    %v107 = vld [vmem:[%s1 + $0x348] sm:$0xff]
    %v108 = vld [vmem:[%s1 + $0x350] sm:$0xff]
    %v109 = vld [vmem:[%s1 + $0x358] sm:$0xff]
    %v110 = vld [vmem:[%s1 + $0x360] sm:$0xff]
    %v111 = vld [vmem:[%s1 + $0x368] sm:$0xff]
    %v112 = vld [vmem:[%s1 + $0x370] sm:$0xff]
    %v113 = vld [vmem:[%s1 + $0x378] sm:$0xff]
    %v114 = vld [vmem:[%s1 + $0x380] sm:$0xff]
    %v115 = vld [vmem:[%s1 + $0x388] sm:$0xff]
    %v116 = vld [vmem:[%s1 + $0x390] sm:$0xff]
    %v117 = vld [vmem:[%s1 + $0x398] sm:$0xff]
    %v118 = vld [vmem:[%s1 + $0x3a0] sm:$0xff]
    %v119 = vld [vmem:[%s1 + $0x3a8] sm:$0xff]
    %v120 = vld [vmem:[%s1 + $0x3b0] sm:$0xff]
    %v121 = vld [vmem:[%s1 + $0x3b8] sm:$0xff]
    %v122 = vld [vmem:[%s1 + $0x3c0] sm:$0xff]
    %v123 = vld [vmem:[%s1 + $0x3c8] sm:$0xff]
    %v124 = vld [vmem:[%s1 + $0x3d0] sm:$0xff]
    %v125 = vld [vmem:[%s1 + $0x3d8] sm:$0xff]
    %v126 = vld [vmem:[%s1 + $0x3e0] sm:$0xff]
    %v127 = vld [vmem:[%s1 + $0x3e8] sm:$0xff]
    %v128 = vld [vmem:[%s1 + $0x3f0] sm:$0xff]
    %v129 = vld [vmem:[%s1 + $0x3f8] sm:$0xff]
    %v130 = vld [vmem:[%s1 + $0x400] sm:$0xff]
    %v131 = vld [vmem:[%s1 + $0x408] sm:$0xff]
    %v132 = vld [vmem:[%s1 + $0x410] sm:$0xff]
    %v133 = vld [vmem:[%s1 + $0x418] sm:$0xff]
    %v134 = vld [vmem:[%s1 + $0x420] sm:$0xff]
    %v135 = vld [vmem:[%s1 + $0x428] sm:$0xff]
    %v136 = vld [vmem:[%s1 + $0x430] sm:$0xff]
    %v137 = vld [vmem:[%s1 + $0x438] sm:$0xff]
    %v138 = vld [vmem:[%s1 + $0x440] sm:$0xff]
    %v139 = vld [vmem:[%s1 + $0x448] sm:$0xff]
    %v140 = vld [vmem:[%s1 + $0x450] sm:$0xff]
    %v141 = vld [vmem:[%s1 + $0x458] sm:$0xff]
    %v142 = vld [vmem:[%s1 + $0x460] sm:$0xff]
    %v143 = vld [vmem:[%s1 + $0x468] sm:$0xff]
    %v144 = vld [vmem:[%s1 + $0x470] sm:$0xff]
    %v145 = vld [vmem:[%s1 + $0x478] sm:$0xff]
    %v146 = vld [vmem:[%s1 + $0x480] sm:$0xff]
    %v147 = vld [vmem:[%s1 + $0x488] sm:$0xff]
    %v148 = vld [vmem:[%s1 + $0x490] sm:$0xff]
    %v149 = vld [vmem:[%s1 + $0x498] sm:$0xff]
    %v150 = vld [vmem:[%s1 + $0x4a0] sm:$0xff]
    %v151 = vld [vmem:[%s1 + $0x4a8] sm:$0xff]
    %v152 = vld [vmem:[%s1 + $0x4b0] sm:$0xff]
    %v153 = vld [vmem:[%s1 + $0x4b8] sm:$0xff]
    %v154 = vld [vmem:[%s1 + $0x4c0] sm:$0xff]
    %v155 = vld [vmem:[%s1 + $0x4c8] sm:$0xff]
    %v156 = vld [vmem:[%s1 + $0x4d0] sm:$0xff]
    %v157 = vld [vmem:[%s1 + $0x4d8] sm:$0xff]
    %v158 = vld [vmem:[%s1 + $0x4e0] sm:$0xff]
    %v159 = vld [vmem:[%s1 + $0x4e8] sm:$0xff]
    %v160 = vld [vmem:[%s1 + $0x4f0] sm:$0xff]
    %v161 = vld [vmem:[%s1 + $0x4f8] sm:$0xff]
    %v162 = vld [vmem:[%s1 + $0x500] sm:$0xff]
    %v163 = vld [vmem:[%s1 + $0x508] sm:$0xff]
    %v164 = vld [vmem:[%s1 + $0x510] sm:$0xff]
    %v165 = vld [vmem:[%s1 + $0x518] sm:$0xff]
    %v166 = vld [vmem:[%s1 + $0x520] sm:$0xff]
    %v167 = vld [vmem:[%s1 + $0x528] sm:$0xff]
    %v168 = vld [vmem:[%s1 + $0x530] sm:$0xff]
    %v169 = vld [vmem:[%s1 + $0x538] sm:$0xff]
    %v170 = vld [vmem:[%s1 + $0x540] sm:$0xff]
    %v171 = vld [vmem:[%s1 + $0x548] sm:$0xff]
    %v172 = vld [vmem:[%s1 + $0x550] sm:$0xff]
    %v173 = vld [vmem:[%s1 + $0x558] sm:$0xff]
    %v174 = vld [vmem:[%s1 + $0x560] sm:$0xff]
    %v175 = vld [vmem:[%s1 + $0x568] sm:$0xff]
    %v176 = vld [vmem:[%s1 + $0x570] sm:$0xff]
    %v177 = vld [vmem:[%s1 + $0x578] sm:$0xff]
    %v178 = vld [vmem:[%s1 + $0x580] sm:$0xff]
    %v179 = vld [vmem:[%s1 + $0x588] sm:$0xff]
    %v180 = vld [vmem:[%s1 + $0x590] sm:$0xff]
    %v181 = vld [vmem:[%s1 + $0x598] sm:$0xff]
    %v182 = vld [vmem:[%s1 + $0x5a0] sm:$0xff]
    %v183 = vld [vmem:[%s1 + $0x5a8] sm:$0xff]
    %v184 = vld [vmem:[%s1 + $0x5b0] sm:$0xff]
    %v185 = vld [vmem:[%s1 + $0x5b8] sm:$0xff]
    %v186 = vld [vmem:[%s1 + $0x5c0] sm:$0xff]
    %v187 = vld [vmem:[%s1 + $0x5c8] sm:$0xff]
    %v188 = vld [vmem:[%s1 + $0x5d0] sm:$0xff]
    %v189 = vld [vmem:[%s1 + $0x5d8] sm:$0xff]
    %v190 = vld [vmem:[%s1 + $0x5e0] sm:$0xff]
    %v191 = vld [vmem:[%s1 + $0x5e8] sm:$0xff]
    %v192 = vld [vmem:[%s1 + $0x5f0] sm:$0xff]
    %v193 = vld [vmem:[%s1 + $0x5f8] sm:$0xff]
    %v194 = vld [vmem:[%s1 + $0x600] sm:$0xff]
    %v195 = vld [vmem:[%s1 + $0x608] sm:$0xff]
    %v196 = vld [vmem:[%s1 + $0x610] sm:$0xff]
    %v197 = vld [vmem:[%s1 + $0x618] sm:$0xff]
    %v198 = vld [vmem:[%s1 + $0x620] sm:$0xff]
    %v199 = vld [vmem:[%s1 + $0x628] sm:$0xff]
    %v200 = vld [vmem:[%s1 + $0x630] sm:$0xff]
    %v201 = vld [vmem:[%s1 + $0x638] sm:$0xff]
    %v202 = vld [vmem:[%s1 + $0x640] sm:$0xff]
    %v203 = vld [vmem:[%s1 + $0x648] sm:$0xff]
    %v204 = vld [vmem:[%s1 + $0x650] sm:$0xff]
    %v205 = vld [vmem:[%s1 + $0x658] sm:$0xff]
    %v206 = vld [vmem:[%s1 + $0x660] sm:$0xff]
    %v207 = vld [vmem:[%s1 + $0x668] sm:$0xff]
    %v208 = vld [vmem:[%s1 + $0x670] sm:$0xff]
    %v209 = vld [vmem:[%s1 + $0x678] sm:$0xff]
    %v210 = vld [vmem:[%s1 + $0x680] sm:$0xff]
    %v211 = vld [vmem:[%s1 + $0x688] sm:$0xff]
    %v212 = vld [vmem:[%s1 + $0x690] sm:$0xff]
    %v213 = vld [vmem:[%s1 + $0x698] sm:$0xff]
    %v214 = vld [vmem:[%s1 + $0x6a0] sm:$0xff]
    %v215 = vld [vmem:[%s1 + $0x6a8] sm:$0xff]
    %v216 = vld [vmem:[%s1 + $0x6b0] sm:$0xff]
    %v217 = vld [vmem:[%s1 + $0x6b8] sm:$0xff]
    %v218 = vld [vmem:[%s1 + $0x6c0] sm:$0xff]
    %v219 = vld [vmem:[%s1 + $0x6c8] sm:$0xff]
    %v220 = vld [vmem:[%s1 + $0x6d0] sm:$0xff]
    %v221 = vld [vmem:[%s1 + $0x6d8] sm:$0xff]
    %v222 = vld [vmem:[%s1 + $0x6e0] sm:$0xff]
    %v223 = vld [vmem:[%s1 + $0x6e8] sm:$0xff]
    %v224 = vld [vmem:[%s1 + $0x6f0] sm:$0xff]
    %v225 = vld [vmem:[%s1 + $0x6f8] sm:$0xff]
    %v226 = vld [vmem:[%s1 + $0x700] sm:$0xff]
    %v227 = vld [vmem:[%s1 + $0x708] sm:$0xff]
    %v228 = vld [vmem:[%s1 + $0x710] sm:$0xff]
    %v229 = vld [vmem:[%s1 + $0x718] sm:$0xff]
    %v230 = vld [vmem:[%s1 + $0x720] sm:$0xff]
    %v231 = vld [vmem:[%s1 + $0x728] sm:$0xff]
    %v232 = vld [vmem:[%s1 + $0x730] sm:$0xff]
    %v233 = vld [vmem:[%s1 + $0x738] sm:$0xff]
    %v234 = vld [vmem:[%s1 + $0x740] sm:$0xff]
    %v235 = vld [vmem:[%s1 + $0x748] sm:$0xff]
    %v236 = vld [vmem:[%s1 + $0x750] sm:$0xff]
    %v237 = vld [vmem:[%s1 + $0x758] sm:$0xff]
    %v238 = vld [vmem:[%s1 + $0x760] sm:$0xff]
    %v239 = vld [vmem:[%s1 + $0x768] sm:$0xff]
    %v240 = vld [vmem:[%s1 + $0x770] sm:$0xff]
    %v241 = vld [vmem:[%s1 + $0x778] sm:$0xff]
    %v242 = vld [vmem:[%s1 + $0x780] sm:$0xff]
    %v243 = vld [vmem:[%s1 + $0x788] sm:$0xff]
    %v244 = vld [vmem:[%s1 + $0x790] sm:$0xff]
    %v245 = vld [vmem:[%s1 + $0x798] sm:$0xff]
    %v246 = vld [vmem:[%s1 + $0x7a0] sm:$0xff]
    %v247 = vld [vmem:[%s1 + $0x7a8] sm:$0xff]
    %v248 = vld [vmem:[%s1 + $0x7b0] sm:$0xff]
    %v249 = vld [vmem:[%s1 + $0x7b8] sm:$0xff]
    %v250 = vld [vmem:[%s1 + $0x7c0] sm:$0xff]
    %v251 = vld [vmem:[%s1 + $0x7c8] sm:$0xff]
    %v252 = vld [vmem:[%s1 + $0x7d0] sm:$0xff]
    %v253 = vld [vmem:[%s1 + $0x7d8] sm:$0xff]
    %v254 = vld [vmem:[%s1 + $0x7e0] sm:$0xff]
    %v255 = vld [vmem:[%s1 + $0x7e8] sm:$0xff]
    %v256 = vld [vmem:[%s1 + $0x7f0] sm:$0xff]
    %v257 = vld [vmem:[%s1 + $0x7f8] sm:$0xff]
    %v258 = vld [vmem:[%s2] sm:$0x1]
    %v260 = vlaneseq
    %v261 = vshrl.u32 %v260, 7
    %v262 = vsub.s32 0, %v261
    %v263 = vrot.slane %v258, %v262
    %265 = vmatprep.subr.mxu0 0.0
    %266 = vmatpush1.msra.mxu0 %v81
    %267 = vmatprep.subr.mxu0 0.0
    %268 = vmatpush1.msra.mxu0 %v80
    %269 = vmatprep.subr.mxu0 0.0
    %270 = vmatpush1.msra.mxu0 %v79
    %271 = vmatprep.subr.mxu0 0.0
    %272 = vmatpush1.msra.mxu0 %v78
    %273 = vmatprep.subr.mxu0 0.0
    %274 = vmatpush1.msra.mxu0 %v77
    %275 = vmatprep.subr.mxu0 0.0
    %276 = vmatpush1.msra.mxu0 %v76
    %277 = vmatprep.subr.mxu0 0.0
    %278 = vmatpush1.msra.mxu0 %v75
    %279 = vmatprep.subr.mxu0 0.0
    %280 = vmatpush1.msra.mxu0 %v74
    %281 = vmatprep.subr.mxu0 0.0
    %282 = vmatpush1.msra.mxu0 %v73
    %283 = vmatprep.subr.mxu0 0.0
    %284 = vmatpush1.msra.mxu0 %v72
    %285 = vmatprep.subr.mxu0 0.0
    %286 = vmatpush1.msra.mxu0 %v71
    %287 = vmatprep.subr.mxu0 0.0
    %288 = vmatpush1.msra.mxu0 %v70
    %289 = vmatprep.subr.mxu0 0.0
    %290 = vmatpush1.msra.mxu0 %v69
    %291 = vmatprep.subr.mxu0 0.0
    %292 = vmatpush1.msra.mxu0 %v68
    %293 = vmatprep.subr.mxu0 0.0
    %294 = vmatpush1.msra.mxu0 %v67
    %295 = vmatprep.subr.mxu0 0.0
    %296 = vmatpush1.msra.mxu0 %v66
    %297 = vmatprep.subr.mxu0 0.0
    %298 = vmatpush2.msra.mxu0 %v97
    %299 = vmatprep.subr.mxu0 0.0
    %300 = vmatpush2.msra.mxu0 %v96
    %301 = vmatprep.subr.mxu0 0.0
    %302 = vmatpush2.msra.mxu0 %v95
    %303 = vmatprep.subr.mxu0 0.0
    %304 = vmatpush2.msra.mxu0 %v94
    %305 = vmatprep.subr.mxu0 0.0
    %306 = vmatpush2.msra.mxu0 %v93
    %307 = vmatprep.subr.mxu0 0.0
    %308 = vmatpush2.msra.mxu0 %v92
    %309 = vmatprep.subr.mxu0 0.0
    %310 = vmatpush2.msra.mxu0 %v91
    %311 = vmatprep.subr.mxu0 0.0
    %312 = vmatpush2.msra.mxu0 %v90
    %313 = vmatprep.subr.mxu0 0.0
    %314 = vmatpush2.msra.mxu0 %v89
    %315 = vmatprep.subr.mxu0 0.0
    %316 = vmatpush2.msra.mxu0 %v88
    %317 = vmatprep.subr.mxu0 0.0
    %318 = vmatpush2.msra.mxu0 %v87
    %319 = vmatprep.subr.mxu0 0.0
    %320 = vmatpush2.msra.mxu0 %v86
    %321 = vmatprep.subr.mxu0 0.0
    %322 = vmatpush2.msra.mxu0 %v85
    %323 = vmatprep.subr.mxu0 0.0
    %324 = vmatpush2.msra.mxu0 %v84
    %325 = vmatprep.subr.mxu0 0.0
    %326 = vmatpush2.msra.mxu0 %v83
    %327 = vmatprep.subr.mxu0 0.0
    %328 = vmatpush2.msra.mxu0 %v82
    %329 = vmatprep.mubr.f32.mxu0 %v31
    %330 = vmatmul.mubr.f32.gmra.mxu0 %v30
    %v331 = vpop.f32.mrf.mxu0
    %v332 = vadd.f32 %v263, %v331
    %v333 = vpop.f32.mrf.mxu0
    %334 = vmatprep.mubr.f32.mxu0 %v43
    %335 = vmatmul.mubr.f32.gmra.mxu0 %v42
    %v336 = vpop.f32.mrf.mxu0
    %v337 = vadd.f32 %v263, %v336
    %v338 = vpop.f32.mrf.mxu0
    %339 = vmatprep.mubr.f32.mxu0 %v55
    %340 = vmatmul.mubr.f32.gmra.mxu0 %v54
    %v341 = vpop.f32.mrf.mxu0
    %v342 = vadd.f32 %v263, %v341
    %v343 = vpop.f32.mrf.mxu0
    %344 = vdwg.mxu0
    %345 = vmatprep.subr.mxu0 0.0
    %346 = vmatpush1.msra.mxu0 %v113
    %347 = vmatprep.subr.mxu0 0.0
    %348 = vmatpush1.msra.mxu0 %v112
    %349 = vmatprep.subr.mxu0 0.0
    %350 = vmatpush1.msra.mxu0 %v111
    %351 = vmatprep.subr.mxu0 0.0
    %352 = vmatpush1.msra.mxu0 %v110
    %353 = vmatprep.subr.mxu0 0.0
    %354 = vmatpush1.msra.mxu0 %v109
    %355 = vmatprep.subr.mxu0 0.0
    %356 = vmatpush1.msra.mxu0 %v108
    %357 = vmatprep.subr.mxu0 0.0
    %358 = vmatpush1.msra.mxu0 %v107
    %359 = vmatprep.subr.mxu0 0.0
    %360 = vmatpush1.msra.mxu0 %v106
    %361 = vmatprep.subr.mxu0 0.0
    %362 = vmatpush1.msra.mxu0 %v105
    %363 = vmatprep.subr.mxu0 0.0
    %364 = vmatpush1.msra.mxu0 %v104
    %365 = vmatprep.subr.mxu0 0.0
    %366 = vmatpush1.msra.mxu0 %v103
    %367 = vmatprep.subr.mxu0 0.0
    %368 = vmatpush1.msra.mxu0 %v102
    %369 = vmatprep.subr.mxu0 0.0
    %370 = vmatpush1.msra.mxu0 %v101
    %371 = vmatprep.subr.mxu0 0.0
    %372 = vmatpush1.msra.mxu0 %v100
    %373 = vmatprep.subr.mxu0 0.0
    %374 = vmatpush1.msra.mxu0 %v99
    %375 = vmatprep.subr.mxu0 0.0
    %376 = vmatpush1.msra.mxu0 %v98
    %377 = vmatprep.subr.mxu0 0.0
    %378 = vmatpush2.msra.mxu0 %v129
    %379 = vmatprep.subr.mxu0 0.0
    %380 = vmatpush2.msra.mxu0 %v128
    %381 = vmatprep.subr.mxu0 0.0
    %382 = vmatpush2.msra.mxu0 %v127
    %383 = vmatprep.subr.mxu0 0.0
    %384 = vmatpush2.msra.mxu0 %v126
    %385 = vmatprep.subr.mxu0 0.0
    %386 = vmatpush2.msra.mxu0 %v125
    %387 = vmatprep.subr.mxu0 0.0
    %388 = vmatpush2.msra.mxu0 %v124
    %389 = vmatprep.subr.mxu0 0.0
    %390 = vmatpush2.msra.mxu0 %v123
    %391 = vmatprep.subr.mxu0 0.0
    %392 = vmatpush2.msra.mxu0 %v122
    %393 = vmatprep.subr.mxu0 0.0
    %394 = vmatpush2.msra.mxu0 %v121
    %395 = vmatprep.subr.mxu0 0.0
    %396 = vmatpush2.msra.mxu0 %v120
    %397 = vmatprep.subr.mxu0 0.0
    %398 = vmatpush2.msra.mxu0 %v119
    %399 = vmatprep.subr.mxu0 0.0
    %400 = vmatpush2.msra.mxu0 %v118
    %401 = vmatprep.subr.mxu0 0.0
    %402 = vmatpush2.msra.mxu0 %v117
    %403 = vmatprep.subr.mxu0 0.0
    %404 = vmatpush2.msra.mxu0 %v116
    %405 = vmatprep.subr.mxu0 0.0
    %406 = vmatpush2.msra.mxu0 %v115
    %407 = vmatprep.subr.mxu0 0.0
    %408 = vmatpush2.msra.mxu0 %v114
    %409 = vmatprep.mubr.f32.mxu0 %v33
    %410 = vmatmul.mubr.f32.gmra.mxu0 %v32
    %v411 = vpop.f32.mrf.mxu0
    %v412 = vadd.f32 %v332, %v411
    %v413 = vpop.f32.mrf.mxu0
    %414 = vmatprep.mubr.f32.mxu0 %v45
    %415 = vmatmul.mubr.f32.gmra.mxu0 %v44
    %v416 = vpop.f32.mrf.mxu0
    %v417 = vadd.f32 %v337, %v416
    %v418 = vpop.f32.mrf.mxu0
    %419 = vmatprep.mubr.f32.mxu0 %v57
    %420 = vmatmul.mubr.f32.gmra.mxu0 %v56
    %v421 = vpop.f32.mrf.mxu0
    %v422 = vadd.f32 %v342, %v421
    %v423 = vpop.f32.mrf.mxu0
    %424 = vdwg.mxu0
    %425 = vmatprep.subr.mxu0 0.0
    %426 = vmatpush1.msra.mxu0 %v145
    %427 = vmatprep.subr.mxu0 0.0
    %428 = vmatpush1.msra.mxu0 %v144
    %429 = vmatprep.subr.mxu0 0.0
    %430 = vmatpush1.msra.mxu0 %v143
    %431 = vmatprep.subr.mxu0 0.0
    %432 = vmatpush1.msra.mxu0 %v142
    %433 = vmatprep.subr.mxu0 0.0
    %434 = vmatpush1.msra.mxu0 %v141
    %435 = vmatprep.subr.mxu0 0.0
    %436 = vmatpush1.msra.mxu0 %v140
    %437 = vmatprep.subr.mxu0 0.0
    %438 = vmatpush1.msra.mxu0 %v139
    %439 = vmatprep.subr.mxu0 0.0
    %440 = vmatpush1.msra.mxu0 %v138
    %441 = vmatprep.subr.mxu0 0.0
    %442 = vmatpush1.msra.mxu0 %v137
    %443 = vmatprep.subr.mxu0 0.0
    %444 = vmatpush1.msra.mxu0 %v136
    %445 = vmatprep.subr.mxu0 0.0
    %446 = vmatpush1.msra.mxu0 %v135
    %447 = vmatprep.subr.mxu0 0.0
    %448 = vmatpush1.msra.mxu0 %v134
    %449 = vmatprep.subr.mxu0 0.0
    %450 = vmatpush1.msra.mxu0 %v133
    %451 = vmatprep.subr.mxu0 0.0
    %452 = vmatpush1.msra.mxu0 %v132
    %453 = vmatprep.subr.mxu0 0.0
    %454 = vmatpush1.msra.mxu0 %v131
    %455 = vmatprep.subr.mxu0 0.0
    %456 = vmatpush1.msra.mxu0 %v130
    %457 = vmatprep.subr.mxu0 0.0
    %458 = vmatpush2.msra.mxu0 %v161
    %459 = vmatprep.subr.mxu0 0.0
    %460 = vmatpush2.msra.mxu0 %v160
    %461 = vmatprep.subr.mxu0 0.0
    %462 = vmatpush2.msra.mxu0 %v159
    %463 = vmatprep.subr.mxu0 0.0
    %464 = vmatpush2.msra.mxu0 %v158
    %465 = vmatprep.subr.mxu0 0.0
    %466 = vmatpush2.msra.mxu0 %v157
    %467 = vmatprep.subr.mxu0 0.0
    %468 = vmatpush2.msra.mxu0 %v156
    %469 = vmatprep.subr.mxu0 0.0
    %470 = vmatpush2.msra.mxu0 %v155
    %471 = vmatprep.subr.mxu0 0.0
    %472 = vmatpush2.msra.mxu0 %v154
    %473 = vmatprep.subr.mxu0 0.0
    %474 = vmatpush2.msra.mxu0 %v153
    %475 = vmatprep.subr.mxu0 0.0
    %476 = vmatpush2.msra.mxu0 %v152
    %477 = vmatprep.subr.mxu0 0.0
    %478 = vmatpush2.msra.mxu0 %v151
    %479 = vmatprep.subr.mxu0 0.0
    %480 = vmatpush2.msra.mxu0 %v150
    %481 = vmatprep.subr.mxu0 0.0
    %482 = vmatpush2.msra.mxu0 %v149
    %483 = vmatprep.subr.mxu0 0.0
    %484 = vmatpush2.msra.mxu0 %v148
    %485 = vmatprep.subr.mxu0 0.0
    %486 = vmatpush2.msra.mxu0 %v147
    %487 = vmatprep.subr.mxu0 0.0
    %488 = vmatpush2.msra.mxu0 %v146
    %489 = vmatprep.mubr.f32.mxu0 %v35
    %490 = vmatmul.mubr.f32.gmra.mxu0 %v34
    %v491 = vpop.f32.mrf.mxu0
    %v492 = vadd.f32 %v412, %v491
    %v493 = vpop.f32.mrf.mxu0
    %494 = vmatprep.mubr.f32.mxu0 %v47
    %495 = vmatmul.mubr.f32.gmra.mxu0 %v46
    %v496 = vpop.f32.mrf.mxu0
    %v497 = vadd.f32 %v417, %v496
    %v498 = vpop.f32.mrf.mxu0
    %499 = vmatprep.mubr.f32.mxu0 %v59
    %500 = vmatmul.mubr.f32.gmra.mxu0 %v58
    %v501 = vpop.f32.mrf.mxu0
    %v502 = vadd.f32 %v422, %v501
    %v503 = vpop.f32.mrf.mxu0
    %504 = vdwg.mxu0
    %505 = vmatprep.subr.mxu0 0.0
    %506 = vmatpush1.msra.mxu0 %v177
    %507 = vmatprep.subr.mxu0 0.0
    %508 = vmatpush1.msra.mxu0 %v176
    %509 = vmatprep.subr.mxu0 0.0
    %510 = vmatpush1.msra.mxu0 %v175
    %511 = vmatprep.subr.mxu0 0.0
    %512 = vmatpush1.msra.mxu0 %v174
    %513 = vmatprep.subr.mxu0 0.0
    %514 = vmatpush1.msra.mxu0 %v173
    %515 = vmatprep.subr.mxu0 0.0
    %516 = vmatpush1.msra.mxu0 %v172
    %517 = vmatprep.subr.mxu0 0.0
    %518 = vmatpush1.msra.mxu0 %v171
    %519 = vmatprep.subr.mxu0 0.0
    %520 = vmatpush1.msra.mxu0 %v170
    %521 = vmatprep.subr.mxu0 0.0
    %522 = vmatpush1.msra.mxu0 %v169
    %523 = vmatprep.subr.mxu0 0.0
    %524 = vmatpush1.msra.mxu0 %v168
    %525 = vmatprep.subr.mxu0 0.0
    %526 = vmatpush1.msra.mxu0 %v167
    %527 = vmatprep.subr.mxu0 0.0
    %528 = vmatpush1.msra.mxu0 %v166
    %529 = vmatprep.subr.mxu0 0.0
    %530 = vmatpush1.msra.mxu0 %v165
    %531 = vmatprep.subr.mxu0 0.0
    %532 = vmatpush1.msra.mxu0 %v164
    %533 = vmatprep.subr.mxu0 0.0
    %534 = vmatpush1.msra.mxu0 %v163
    %535 = vmatprep.subr.mxu0 0.0
    %536 = vmatpush1.msra.mxu0 %v162
    %537 = vmatprep.subr.mxu0 0.0
    %538 = vmatpush2.msra.mxu0 %v193
    %539 = vmatprep.subr.mxu0 0.0
    %540 = vmatpush2.msra.mxu0 %v192
    %541 = vmatprep.subr.mxu0 0.0
    %542 = vmatpush2.msra.mxu0 %v191
    %543 = vmatprep.subr.mxu0 0.0
    %544 = vmatpush2.msra.mxu0 %v190
    %545 = vmatprep.subr.mxu0 0.0
    %546 = vmatpush2.msra.mxu0 %v189
    %547 = vmatprep.subr.mxu0 0.0
    %548 = vmatpush2.msra.mxu0 %v188
    %549 = vmatprep.subr.mxu0 0.0
    %550 = vmatpush2.msra.mxu0 %v187
    %551 = vmatprep.subr.mxu0 0.0
    %552 = vmatpush2.msra.mxu0 %v186
    %553 = vmatprep.subr.mxu0 0.0
    %554 = vmatpush2.msra.mxu0 %v185
    %555 = vmatprep.subr.mxu0 0.0
    %556 = vmatpush2.msra.mxu0 %v184
    %557 = vmatprep.subr.mxu0 0.0
    %558 = vmatpush2.msra.mxu0 %v183
    %559 = vmatprep.subr.mxu0 0.0
    %560 = vmatpush2.msra.mxu0 %v182
    %561 = vmatprep.subr.mxu0 0.0
    %562 = vmatpush2.msra.mxu0 %v181
    %563 = vmatprep.subr.mxu0 0.0
    %564 = vmatpush2.msra.mxu0 %v180
    %565 = vmatprep.subr.mxu0 0.0
    %566 = vmatpush2.msra.mxu0 %v179
    %567 = vmatprep.subr.mxu0 0.0
    %568 = vmatpush2.msra.mxu0 %v178
    %569 = vmatprep.mubr.f32.mxu0 %v37
    %570 = vmatmul.mubr.f32.gmra.mxu0 %v36
    %v571 = vpop.f32.mrf.mxu0
    %v572 = vadd.f32 %v492, %v571
    %v573 = vpop.f32.mrf.mxu0
    %574 = vmatprep.mubr.f32.mxu0 %v49
    %575 = vmatmul.mubr.f32.gmra.mxu0 %v48
    %v576 = vpop.f32.mrf.mxu0
    %v577 = vadd.f32 %v497, %v576
    %v578 = vpop.f32.mrf.mxu0
    %579 = vmatprep.mubr.f32.mxu0 %v61
    %580 = vmatmul.mubr.f32.gmra.mxu0 %v60
    %v581 = vpop.f32.mrf.mxu0
    %v582 = vadd.f32 %v502, %v581
    %v583 = vpop.f32.mrf.mxu0
    %584 = vdwg.mxu0
    %585 = vmatprep.subr.mxu0 0.0
    %586 = vmatpush1.msra.mxu0 %v209
    %587 = vmatprep.subr.mxu0 0.0
    %588 = vmatpush1.msra.mxu0 %v208
    %589 = vmatprep.subr.mxu0 0.0
    %590 = vmatpush1.msra.mxu0 %v207
    %591 = vmatprep.subr.mxu0 0.0
    %592 = vmatpush1.msra.mxu0 %v206
    %593 = vmatprep.subr.mxu0 0.0
    %594 = vmatpush1.msra.mxu0 %v205
    %595 = vmatprep.subr.mxu0 0.0
    %596 = vmatpush1.msra.mxu0 %v204
    %597 = vmatprep.subr.mxu0 0.0
    %598 = vmatpush1.msra.mxu0 %v203
    %599 = vmatprep.subr.mxu0 0.0
    %600 = vmatpush1.msra.mxu0 %v202
    %601 = vmatprep.subr.mxu0 0.0
    %602 = vmatpush1.msra.mxu0 %v201
    %603 = vmatprep.subr.mxu0 0.0
    %604 = vmatpush1.msra.mxu0 %v200
    %605 = vmatprep.subr.mxu0 0.0
    %606 = vmatpush1.msra.mxu0 %v199
    %607 = vmatprep.subr.mxu0 0.0
    %608 = vmatpush1.msra.mxu0 %v198
    %609 = vmatprep.subr.mxu0 0.0
    %610 = vmatpush1.msra.mxu0 %v197
    %611 = vmatprep.subr.mxu0 0.0
    %612 = vmatpush1.msra.mxu0 %v196
    %613 = vmatprep.subr.mxu0 0.0
    %614 = vmatpush1.msra.mxu0 %v195
    %615 = vmatprep.subr.mxu0 0.0
    %616 = vmatpush1.msra.mxu0 %v194
    %617 = vmatprep.subr.mxu0 0.0
    %618 = vmatpush2.msra.mxu0 %v225
    %619 = vmatprep.subr.mxu0 0.0
    %620 = vmatpush2.msra.mxu0 %v224
    %621 = vmatprep.subr.mxu0 0.0
    %622 = vmatpush2.msra.mxu0 %v223
    %623 = vmatprep.subr.mxu0 0.0
    %624 = vmatpush2.msra.mxu0 %v222
    %625 = vmatprep.subr.mxu0 0.0
    %626 = vmatpush2.msra.mxu0 %v221
    %627 = vmatprep.subr.mxu0 0.0
    %628 = vmatpush2.msra.mxu0 %v220
    %629 = vmatprep.subr.mxu0 0.0
    %630 = vmatpush2.msra.mxu0 %v219
    %631 = vmatprep.subr.mxu0 0.0
    %632 = vmatpush2.msra.mxu0 %v218
    %633 = vmatprep.subr.mxu0 0.0
    %634 = vmatpush2.msra.mxu0 %v217
    %635 = vmatprep.subr.mxu0 0.0
    %636 = vmatpush2.msra.mxu0 %v216
    %637 = vmatprep.subr.mxu0 0.0
    %638 = vmatpush2.msra.mxu0 %v215
    %639 = vmatprep.subr.mxu0 0.0
    %640 = vmatpush2.msra.mxu0 %v214
    %641 = vmatprep.subr.mxu0 0.0
    %642 = vmatpush2.msra.mxu0 %v213
    %643 = vmatprep.subr.mxu0 0.0
    %644 = vmatpush2.msra.mxu0 %v212
    %645 = vmatprep.subr.mxu0 0.0
    %646 = vmatpush2.msra.mxu0 %v211
    %647 = vmatprep.subr.mxu0 0.0
    %648 = vmatpush2.msra.mxu0 %v210
    %649 = vmatprep.mubr.f32.mxu0 %v39
    %650 = vmatmul.mubr.f32.gmra.mxu0 %v38
    %v651 = vpop.f32.mrf.mxu0
    %v652 = vadd.f32 %v572, %v651
    %v653 = vpop.f32.mrf.mxu0
    %654 = vmatprep.mubr.f32.mxu0 %v51
    %655 = vmatmul.mubr.f32.gmra.mxu0 %v50
    %v656 = vpop.f32.mrf.mxu0
    %v657 = vadd.f32 %v577, %v656
    %v658 = vpop.f32.mrf.mxu0
    %659 = vmatprep.mubr.f32.mxu0 %v63
    %660 = vmatmul.mubr.f32.gmra.mxu0 %v62
    %v661 = vpop.f32.mrf.mxu0
    %v662 = vadd.f32 %v582, %v661
    %v663 = vpop.f32.mrf.mxu0
    %664 = vdwg.mxu0
    %665 = vmatprep.subr.mxu0 0.0
    %666 = vmatpush1.msra.mxu0 %v241
    %667 = vmatprep.subr.mxu0 0.0
    %668 = vmatpush1.msra.mxu0 %v240
    %669 = vmatprep.subr.mxu0 0.0
    %670 = vmatpush1.msra.mxu0 %v239
    %671 = vmatprep.subr.mxu0 0.0
    %672 = vmatpush1.msra.mxu0 %v238
    %673 = vmatprep.subr.mxu0 0.0
    %674 = vmatpush1.msra.mxu0 %v237
    %675 = vmatprep.subr.mxu0 0.0
    %676 = vmatpush1.msra.mxu0 %v236
    %677 = vmatprep.subr.mxu0 0.0
    %678 = vmatpush1.msra.mxu0 %v235
    %679 = vmatprep.subr.mxu0 0.0
    %680 = vmatpush1.msra.mxu0 %v234
    %681 = vmatprep.subr.mxu0 0.0
    %682 = vmatpush1.msra.mxu0 %v233
    %683 = vmatprep.subr.mxu0 0.0
    %684 = vmatpush1.msra.mxu0 %v232
    %685 = vmatprep.subr.mxu0 0.0
    %686 = vmatpush1.msra.mxu0 %v231
    %687 = vmatprep.subr.mxu0 0.0
    %688 = vmatpush1.msra.mxu0 %v230
    %689 = vmatprep.subr.mxu0 0.0
    %690 = vmatpush1.msra.mxu0 %v229
    %691 = vmatprep.subr.mxu0 0.0
    %692 = vmatpush1.msra.mxu0 %v228
    %693 = vmatprep.subr.mxu0 0.0
    %694 = vmatpush1.msra.mxu0 %v227
    %695 = vmatprep.subr.mxu0 0.0
    %696 = vmatpush1.msra.mxu0 %v226
    %697 = vmatprep.subr.mxu0 0.0
    %698 = vmatpush2.msra.mxu0 %v257
    %699 = vmatprep.subr.mxu0 0.0
    %700 = vmatpush2.msra.mxu0 %v256
    %701 = vmatprep.subr.mxu0 0.0
    %702 = vmatpush2.msra.mxu0 %v255
    %703 = vmatprep.subr.mxu0 0.0
    %704 = vmatpush2.msra.mxu0 %v254
    %705 = vmatprep.subr.mxu0 0.0
    %706 = vmatpush2.msra.mxu0 %v253
    %707 = vmatprep.subr.mxu0 0.0
    %708 = vmatpush2.msra.mxu0 %v252
    %709 = vmatprep.subr.mxu0 0.0
    %710 = vmatpush2.msra.mxu0 %v251
    %711 = vmatprep.subr.mxu0 0.0
    %712 = vmatpush2.msra.mxu0 %v250
    %713 = vmatprep.subr.mxu0 0.0
    %714 = vmatpush2.msra.mxu0 %v249
    %715 = vmatprep.subr.mxu0 0.0
    %716 = vmatpush2.msra.mxu0 %v248
    %717 = vmatprep.subr.mxu0 0.0
    %718 = vmatpush2.msra.mxu0 %v247
    %719 = vmatprep.subr.mxu0 0.0
    %720 = vmatpush2.msra.mxu0 %v246
    %721 = vmatprep.subr.mxu0 0.0
    %722 = vmatpush2.msra.mxu0 %v245
    %723 = vmatprep.subr.mxu0 0.0
    %724 = vmatpush2.msra.mxu0 %v244
    %725 = vmatprep.subr.mxu0 0.0
    %726 = vmatpush2.msra.mxu0 %v243
    %727 = vmatprep.subr.mxu0 0.0
    %728 = vmatpush2.msra.mxu0 %v242
    %729 = vmatprep.mubr.f32.mxu0 %v41
    %730 = vmatmul.mubr.f32.gmra.mxu0 %v40
    %v731 = vpop.f32.mrf.mxu0
    %v732 = vadd.f32 %v652, %v731
    %v733 = vpop.f32.mrf.mxu0
    %734 = vmatprep.mubr.f32.mxu0 %v53
    %735 = vmatmul.mubr.f32.gmra.mxu0 %v52
    %v736 = vpop.f32.mrf.mxu0
    %v737 = vadd.f32 %v657, %v736
    %v738 = vpop.f32.mrf.mxu0
    %739 = vmatprep.mubr.f32.mxu0 %v65
    %740 = vmatmul.mubr.f32.gmra.mxu0 %v64
    %v741 = vpop.f32.mrf.mxu0
    %v742 = vadd.f32 %v662, %v741
    %v743 = vpop.f32.mrf.mxu0
    %744 = vdwg.mxu0
    %v745 = vmax.f32 %v732, 0.0
    %v746 = vmax.f32 %v737, 0.0
    %v747 = vmax.f32 %v742, 0.0
    %v748 = vld [vmem:[%s3] sm:$0xff]
    %v749 = vld [vmem:[%s3 + $0x8] sm:$0xff]
    %v750 = vld [vmem:[%s3 + $0x10] sm:$0xff]
    %v751 = vld [vmem:[%s3 + $0x18] sm:$0xff]
    %v752 = vld [vmem:[%s3 + $0x20] sm:$0xff]
    %v753 = vld [vmem:[%s3 + $0x28] sm:$0xff]
    %v754 = vld [vmem:[%s3 + $0x30] sm:$0xff]
    %v755 = vld [vmem:[%s3 + $0x38] sm:$0xff]
    %v756 = vld [vmem:[%s3 + $0x40] sm:$0xff]
    %v757 = vld [vmem:[%s3 + $0x48] sm:$0xff]
    %v758 = vld [vmem:[%s0 + $0x20] sm:$0xff]
    %v759 = vld [vmem:[%s0 + $0x28] sm:$0xff]
    %v760 = vld [vmem:[%s0 + $0x30] sm:$0xff]
    %v761 = vld [vmem:[%s0 + $0x38] sm:$0xff]
    %v762 = vld [vmem:[%s0 + $0x40] sm:$0xff]
    %v763 = vld [vmem:[%s0 + $0x48] sm:$0xff]
    %v764 = vld [vmem:[%s0 + $0x50] sm:$0xff]
    %v765 = vld [vmem:[%s0 + $0x58] sm:$0xff]
    %v766 = vld [vmem:[%s0 + $0x60] sm:$0xff]
    %v767 = vld [vmem:[%s0 + $0x68] sm:$0xff]
    %v768 = vld [vmem:[%s0 + $0x70] sm:$0xff]
    %v769 = vld [vmem:[%s0 + $0x78] sm:$0xff]
    %v770 = vld [vmem:[%s0 + $0x80] sm:$0xff]
    %v771 = vld [vmem:[%s0 + $0x88] sm:$0xff]
    %v772 = vld [vmem:[%s0 + $0x90] sm:$0xff]
    %v773 = vld [vmem:[%s0 + $0x98] sm:$0xff]
    %v774 = vld [vmem:[%s0 + $0xe0] sm:$0xff]
    %v775 = vld [vmem:[%s0 + $0xe8] sm:$0xff]
    %v776 = vld [vmem:[%s0 + $0xf0] sm:$0xff]
    %v777 = vld [vmem:[%s0 + $0xf8] sm:$0xff]
    %v778 = vld [vmem:[%s0 + $0x100] sm:$0xff]
    %v779 = vld [vmem:[%s0 + $0x108] sm:$0xff]
    %v780 = vld [vmem:[%s0 + $0x110] sm:$0xff]
    %v781 = vld [vmem:[%s0 + $0x118] sm:$0xff]
    %v782 = vld [vmem:[%s0 + $0x120] sm:$0xff]
    %v783 = vld [vmem:[%s0 + $0x128] sm:$0xff]
    %v784 = vld [vmem:[%s0 + $0x130] sm:$0xff]
    %v785 = vld [vmem:[%s0 + $0x138] sm:$0xff]
    %v786 = vld [vmem:[%s0 + $0x140] sm:$0xff]
    %v787 = vld [vmem:[%s0 + $0x148] sm:$0xff]
    %v788 = vld [vmem:[%s0 + $0x150] sm:$0xff]
    %v789 = vld [vmem:[%s0 + $0x158] sm:$0xff]
    %v790 = vld [vmem:[%s0 + $0x1a0] sm:$0xff]
    %v791 = vld [vmem:[%s0 + $0x1a8] sm:$0xff]
    %v792 = vld [vmem:[%s0 + $0x1b0] sm:$0xff]
    %v793 = vld [vmem:[%s0 + $0x1b8] sm:$0xff]
    %v794 = vld [vmem:[%s0 + $0x1c0] sm:$0xff]
    %v795 = vld [vmem:[%s0 + $0x1c8] sm:$0xff]
    %v796 = vld [vmem:[%s0 + $0x1d0] sm:$0xff]
    %v797 = vld [vmem:[%s0 + $0x1d8] sm:$0xff]
    %v798 = vld [vmem:[%s0 + $0x1e0] sm:$0xff]
    %v799 = vld [vmem:[%s0 + $0x1e8] sm:$0xff]
    %v800 = vld [vmem:[%s0 + $0x1f0] sm:$0xff]
    %v801 = vld [vmem:[%s0 + $0x1f8] sm:$0xff]
    %v802 = vld [vmem:[%s0 + $0x200] sm:$0xff]
    %v803 = vld [vmem:[%s0 + $0x208] sm:$0xff]
    %v804 = vld [vmem:[%s0 + $0x210] sm:$0xff]
    %v805 = vld [vmem:[%s0 + $0x218] sm:$0xff]
    %v806 = vld [vmem:[%s1] sm:$0xff]
    %v807 = vld [vmem:[%s1 + $0x8] sm:$0xff]
    %v808 = vld [vmem:[%s1 + $0x10] sm:$0xff]
    %v809 = vld [vmem:[%s1 + $0x18] sm:$0xff]
    %v810 = vld [vmem:[%s1 + $0x20] sm:$0xff]
    %v811 = vld [vmem:[%s1 + $0x28] sm:$0xff]
    %v812 = vld [vmem:[%s1 + $0x30] sm:$0xff]
    %v813 = vld [vmem:[%s1 + $0x38] sm:$0xff]
    %v814 = vld [vmem:[%s1 + $0x40] sm:$0xff]
    %v815 = vld [vmem:[%s1 + $0x48] sm:$0xff]
    %v816 = vld [vmem:[%s1 + $0x50] sm:$0xff]
    %v817 = vld [vmem:[%s1 + $0x58] sm:$0xff]
    %v818 = vld [vmem:[%s1 + $0x60] sm:$0xff]
    %v819 = vld [vmem:[%s1 + $0x68] sm:$0xff]
    %v820 = vld [vmem:[%s1 + $0x70] sm:$0xff]
    %v821 = vld [vmem:[%s1 + $0x78] sm:$0xff]
    %v822 = vld [vmem:[%s1 + $0x80] sm:$0xff]
    %v823 = vld [vmem:[%s1 + $0x88] sm:$0xff]
    %v824 = vld [vmem:[%s1 + $0x90] sm:$0xff]
    %v825 = vld [vmem:[%s1 + $0x98] sm:$0xff]
    %v826 = vld [vmem:[%s1 + $0xa0] sm:$0xff]
    %v827 = vld [vmem:[%s1 + $0xa8] sm:$0xff]
    %v828 = vld [vmem:[%s1 + $0xb0] sm:$0xff]
    %v829 = vld [vmem:[%s1 + $0xb8] sm:$0xff]
    %v830 = vld [vmem:[%s1 + $0xc0] sm:$0xff]
    %v831 = vld [vmem:[%s1 + $0xc8] sm:$0xff]
    %v832 = vld [vmem:[%s1 + $0xd0] sm:$0xff]
    %v833 = vld [vmem:[%s1 + $0xd8] sm:$0xff]
    %v834 = vld [vmem:[%s1 + $0xe0] sm:$0xff]
    %v835 = vld [vmem:[%s1 + $0xe8] sm:$0xff]
    %v836 = vld [vmem:[%s1 + $0xf0] sm:$0xff]
    %v837 = vld [vmem:[%s1 + $0xf8] sm:$0xff]
    %v838 = vld [vmem:[%s1 + $0x100] sm:$0xff]
    %v839 = vld [vmem:[%s1 + $0x108] sm:$0xff]
    %v840 = vld [vmem:[%s1 + $0x110] sm:$0xff]
    %v841 = vld [vmem:[%s1 + $0x118] sm:$0xff]
    %v842 = vld [vmem:[%s1 + $0x120] sm:$0xff]
    %v843 = vld [vmem:[%s1 + $0x128] sm:$0xff]
    %v844 = vld [vmem:[%s1 + $0x130] sm:$0xff]
    %v845 = vld [vmem:[%s1 + $0x138] sm:$0xff]
    %v846 = vld [vmem:[%s1 + $0x140] sm:$0xff]
    %v847 = vld [vmem:[%s1 + $0x148] sm:$0xff]
    %v848 = vld [vmem:[%s1 + $0x150] sm:$0xff]
    %v849 = vld [vmem:[%s1 + $0x158] sm:$0xff]
    %v850 = vld [vmem:[%s1 + $0x160] sm:$0xff]
    %v851 = vld [vmem:[%s1 + $0x168] sm:$0xff]
    %v852 = vld [vmem:[%s1 + $0x170] sm:$0xff]
    %v853 = vld [vmem:[%s1 + $0x178] sm:$0xff]
    %v854 = vld [vmem:[%s1 + $0x180] sm:$0xff]
    %v855 = vld [vmem:[%s1 + $0x188] sm:$0xff]
    %v856 = vld [vmem:[%s1 + $0x190] sm:$0xff]
    %v857 = vld [vmem:[%s1 + $0x198] sm:$0xff]
    %v858 = vld [vmem:[%s1 + $0x1a0] sm:$0xff]
    %v859 = vld [vmem:[%s1 + $0x1a8] sm:$0xff]
    %v860 = vld [vmem:[%s1 + $0x1b0] sm:$0xff]
    %v861 = vld [vmem:[%s1 + $0x1b8] sm:$0xff]
    %v862 = vld [vmem:[%s1 + $0x1c0] sm:$0xff]
    %v863 = vld [vmem:[%s1 + $0x1c8] sm:$0xff]
    %v864 = vld [vmem:[%s1 + $0x1d0] sm:$0xff]
    %v865 = vld [vmem:[%s1 + $0x1d8] sm:$0xff]
    %v866 = vld [vmem:[%s1 + $0x1e0] sm:$0xff]
    %v867 = vld [vmem:[%s1 + $0x1e8] sm:$0xff]
    %v868 = vld [vmem:[%s1 + $0x1f0] sm:$0xff]
    %v869 = vld [vmem:[%s1 + $0x1f8] sm:$0xff]
    %870 = vmatprep.subr.mxu0 0.0
    %871 = vmatpush1.msra.mxu0 %v821
    %872 = vmatprep.subr.mxu0 0.0
    %873 = vmatpush1.msra.mxu0 %v820
    %874 = vmatprep.subr.mxu0 0.0
    %875 = vmatpush1.msra.mxu0 %v819
    %876 = vmatprep.subr.mxu0 0.0
    %877 = vmatpush1.msra.mxu0 %v818
    %878 = vmatprep.subr.mxu0 0.0
    %879 = vmatpush1.msra.mxu0 %v817
    %880 = vmatprep.subr.mxu0 0.0
    %881 = vmatpush1.msra.mxu0 %v816
    %882 = vmatprep.subr.mxu0 0.0
    %883 = vmatpush1.msra.mxu0 %v815
    %884 = vmatprep.subr.mxu0 0.0
    %885 = vmatpush1.msra.mxu0 %v814
    %886 = vmatprep.subr.mxu0 0.0
    %887 = vmatpush1.msra.mxu0 %v813
    %888 = vmatprep.subr.mxu0 0.0
    %889 = vmatpush1.msra.mxu0 %v812
    %890 = vmatprep.subr.mxu0 0.0
    %891 = vmatpush1.msra.mxu0 %v811
    %892 = vmatprep.subr.mxu0 0.0
    %893 = vmatpush1.msra.mxu0 %v810
    %894 = vmatprep.subr.mxu0 0.0
    %895 = vmatpush1.msra.mxu0 %v809
    %896 = vmatprep.subr.mxu0 0.0
    %897 = vmatpush1.msra.mxu0 %v808
    %898 = vmatprep.subr.mxu0 0.0
    %899 = vmatpush1.msra.mxu0 %v807
    %900 = vmatprep.subr.mxu0 0.0
    %901 = vmatpush1.msra.mxu0 %v806
    %902 = vmatprep.subr.mxu0 0.0
    %903 = vmatpush2.msra.mxu0 %v837
    %904 = vmatprep.subr.mxu0 0.0
    %905 = vmatpush2.msra.mxu0 %v836
    %906 = vmatprep.subr.mxu0 0.0
    %907 = vmatpush2.msra.mxu0 %v835
    %908 = vmatprep.subr.mxu0 0.0
    %909 = vmatpush2.msra.mxu0 %v834
    %910 = vmatprep.subr.mxu0 0.0
    %911 = vmatpush2.msra.mxu0 %v833
    %912 = vmatprep.subr.mxu0 0.0
    %913 = vmatpush2.msra.mxu0 %v832
    %914 = vmatprep.subr.mxu0 0.0
    %915 = vmatpush2.msra.mxu0 %v831
    %916 = vmatprep.subr.mxu0 0.0
    %917 = vmatpush2.msra.mxu0 %v830
    %918 = vmatprep.subr.mxu0 0.0
    %919 = vmatpush2.msra.mxu0 %v829
    %920 = vmatprep.subr.mxu0 0.0
    %921 = vmatpush2.msra.mxu0 %v828
    %922 = vmatprep.subr.mxu0 0.0
    %923 = vmatpush2.msra.mxu0 %v827
    %924 = vmatprep.subr.mxu0 0.0
    %925 = vmatpush2.msra.mxu0 %v826
    %926 = vmatprep.subr.mxu0 0.0
    %927 = vmatpush2.msra.mxu0 %v825
    %928 = vmatprep.subr.mxu0 0.0
    %929 = vmatpush2.msra.mxu0 %v824
    %930 = vmatprep.subr.mxu0 0.0
    %931 = vmatpush2.msra.mxu0 %v823
    %932 = vmatprep.subr.mxu0 0.0
    %933 = vmatpush2.msra.mxu0 %v822
    %934 = vmatprep.mubr.f32.mxu0 %v759
    %935 = vmatmul.mubr.f32.gmra.mxu0 %v758
    %v936 = vpop.f32.mrf.mxu0
    %v937 = vadd.f32 %v263, %v936
    %v938 = vpop.f32.mrf.mxu0
    %939 = vmatprep.mubr.f32.mxu0 %v775
    %940 = vmatmul.mubr.f32.gmra.mxu0 %v774
    %v941 = vpop.f32.mrf.mxu0
    %v942 = vadd.f32 %v263, %v941
    %v943 = vpop.f32.mrf.mxu0
    %944 = vmatprep.mubr.f32.mxu0 %v791
    %945 = vmatmul.mubr.f32.gmra.mxu0 %v790
    %v946 = vpop.f32.mrf.mxu0
    %v947 = vadd.f32 %v263, %v946
    %v948 = vpop.f32.mrf.mxu0
    %949 = vdwg.mxu0
    %950 = vmatprep.subr.mxu0 0.0
    %951 = vmatpush1.msra.mxu0 %v853
    %952 = vmatprep.subr.mxu0 0.0
    %953 = vmatpush1.msra.mxu0 %v852
    %954 = vmatprep.subr.mxu0 0.0
    %955 = vmatpush1.msra.mxu0 %v851
    %956 = vmatprep.subr.mxu0 0.0
    %957 = vmatpush1.msra.mxu0 %v850
    %958 = vmatprep.subr.mxu0 0.0
    %959 = vmatpush1.msra.mxu0 %v849
    %960 = vmatprep.subr.mxu0 0.0
    %961 = vmatpush1.msra.mxu0 %v848
    %962 = vmatprep.subr.mxu0 0.0
    %963 = vmatpush1.msra.mxu0 %v847
    %964 = vmatprep.subr.mxu0 0.0
    %965 = vmatpush1.msra.mxu0 %v846
    %966 = vmatprep.subr.mxu0 0.0
    %967 = vmatpush1.msra.mxu0 %v845
    %968 = vmatprep.subr.mxu0 0.0
    %969 = vmatpush1.msra.mxu0 %v844
    %970 = vmatprep.subr.mxu0 0.0
    %971 = vmatpush1.msra.mxu0 %v843
    %972 = vmatprep.subr.mxu0 0.0
    %973 = vmatpush1.msra.mxu0 %v842
    %974 = vmatprep.subr.mxu0 0.0
    %975 = vmatpush1.msra.mxu0 %v841
    %976 = vmatprep.subr.mxu0 0.0
    %977 = vmatpush1.msra.mxu0 %v840
    %978 = vmatprep.subr.mxu0 0.0
    %979 = vmatpush1.msra.mxu0 %v839
    %980 = vmatprep.subr.mxu0 0.0
    %981 = vmatpush1.msra.mxu0 %v838
    %982 = vmatprep.subr.mxu0 0.0
    %983 = vmatpush2.msra.mxu0 %v869
    %984 = vmatprep.subr.mxu0 0.0
    %985 = vmatpush2.msra.mxu0 %v868
    %986 = vmatprep.subr.mxu0 0.0
    %987 = vmatpush2.msra.mxu0 %v867
    %988 = vmatprep.subr.mxu0 0.0
    %989 = vmatpush2.msra.mxu0 %v866
    %990 = vmatprep.subr.mxu0 0.0
    %991 = vmatpush2.msra.mxu0 %v865
    %992 = vmatprep.subr.mxu0 0.0
    %993 = vmatpush2.msra.mxu0 %v864
    %994 = vmatprep.subr.mxu0 0.0
    %995 = vmatpush2.msra.mxu0 %v863
    %996 = vmatprep.subr.mxu0 0.0
    %997 = vmatpush2.msra.mxu0 %v862
    %998 = vmatprep.subr.mxu0 0.0
    %999 = vmatpush2.msra.mxu0 %v861
    %1000 = vmatprep.subr.mxu0 0.0
    %1001 = vmatpush2.msra.mxu0 %v860
    %1002 = vmatprep.subr.mxu0 0.0
    %1003 = vmatpush2.msra.mxu0 %v859
    %1004 = vmatprep.subr.mxu0 0.0
    %1005 = vmatpush2.msra.mxu0 %v858
    %1006 = vmatprep.subr.mxu0 0.0
    %1007 = vmatpush2.msra.mxu0 %v857
    %1008 = vmatprep.subr.mxu0 0.0
    %1009 = vmatpush2.msra.mxu0 %v856
    %1010 = vmatprep.subr.mxu0 0.0
    %1011 = vmatpush2.msra.mxu0 %v855
    %1012 = vmatprep.subr.mxu0 0.0
    %1013 = vmatpush2.msra.mxu0 %v854
    %1014 = vmatprep.mubr.f32.mxu0 %v761
    %1015 = vmatmul.mubr.f32.gmra.mxu0 %v760
    %v1016 = vpop.f32.mrf.mxu0
    %v1017 = vadd.f32 %v937, %v1016
    %v1018 = vpop.f32.mrf.mxu0
    %1019 = vmatprep.mubr.f32.mxu0 %v777
    %1020 = vmatmul.mubr.f32.gmra.mxu0 %v776
    %v1021 = vpop.f32.mrf.mxu0
    %v1022 = vadd.f32 %v942, %v1021
    %v1023 = vpop.f32.mrf.mxu0
    %1024 = vmatprep.mubr.f32.mxu0 %v793
    %1025 = vmatmul.mubr.f32.gmra.mxu0 %v792
    %v1026 = vpop.f32.mrf.mxu0
    %v1027 = vadd.f32 %v947, %v1026
    %v1028 = vpop.f32.mrf.mxu0
    %1029 = vdwg.mxu0
    %1030 = vmatprep.subr.mxu0 0.0
    %1031 = vmatpush1.msra.mxu0 %v81
    %1032 = vmatprep.subr.mxu0 0.0
    %1033 = vmatpush1.msra.mxu0 %v80
    %1034 = vmatprep.subr.mxu0 0.0
    %1035 = vmatpush1.msra.mxu0 %v79
    %1036 = vmatprep.subr.mxu0 0.0
    %1037 = vmatpush1.msra.mxu0 %v78
    %1038 = vmatprep.subr.mxu0 0.0
    %1039 = vmatpush1.msra.mxu0 %v77
    %1040 = vmatprep.subr.mxu0 0.0
    %1041 = vmatpush1.msra.mxu0 %v76
    %1042 = vmatprep.subr.mxu0 0.0
    %1043 = vmatpush1.msra.mxu0 %v75
    %1044 = vmatprep.subr.mxu0 0.0
    %1045 = vmatpush1.msra.mxu0 %v74
    %1046 = vmatprep.subr.mxu0 0.0
    %1047 = vmatpush1.msra.mxu0 %v73
    %1048 = vmatprep.subr.mxu0 0.0
    %1049 = vmatpush1.msra.mxu0 %v72
    %1050 = vmatprep.subr.mxu0 0.0
    %1051 = vmatpush1.msra.mxu0 %v71
    %1052 = vmatprep.subr.mxu0 0.0
    %1053 = vmatpush1.msra.mxu0 %v70
    %1054 = vmatprep.subr.mxu0 0.0
    %1055 = vmatpush1.msra.mxu0 %v69
    %1056 = vmatprep.subr.mxu0 0.0
    %1057 = vmatpush1.msra.mxu0 %v68
    %1058 = vmatprep.subr.mxu0 0.0
    %1059 = vmatpush1.msra.mxu0 %v67
    %1060 = vmatprep.subr.mxu0 0.0
    %1061 = vmatpush1.msra.mxu0 %v66
    %1062 = vmatprep.subr.mxu0 0.0
    %1063 = vmatpush2.msra.mxu0 %v97
    %1064 = vmatprep.subr.mxu0 0.0
    %1065 = vmatpush2.msra.mxu0 %v96
    %1066 = vmatprep.subr.mxu0 0.0
    %1067 = vmatpush2.msra.mxu0 %v95
    %1068 = vmatprep.subr.mxu0 0.0
    %1069 = vmatpush2.msra.mxu0 %v94
    %1070 = vmatprep.subr.mxu0 0.0
    %1071 = vmatpush2.msra.mxu0 %v93
    %1072 = vmatprep.subr.mxu0 0.0
    %1073 = vmatpush2.msra.mxu0 %v92
    %1074 = vmatprep.subr.mxu0 0.0
    %1075 = vmatpush2.msra.mxu0 %v91
    %1076 = vmatprep.subr.mxu0 0.0
    %1077 = vmatpush2.msra.mxu0 %v90
    %1078 = vmatprep.subr.mxu0 0.0
    %1079 = vmatpush2.msra.mxu0 %v89
    %1080 = vmatprep.subr.mxu0 0.0
    %1081 = vmatpush2.msra.mxu0 %v88
    %1082 = vmatprep.subr.mxu0 0.0
    %1083 = vmatpush2.msra.mxu0 %v87
    %1084 = vmatprep.subr.mxu0 0.0
    %1085 = vmatpush2.msra.mxu0 %v86
    %1086 = vmatprep.subr.mxu0 0.0
    %1087 = vmatpush2.msra.mxu0 %v85
    %1088 = vmatprep.subr.mxu0 0.0
    %1089 = vmatpush2.msra.mxu0 %v84
    %1090 = vmatprep.subr.mxu0 0.0
    %1091 = vmatpush2.msra.mxu0 %v83
    %1092 = vmatprep.subr.mxu0 0.0
    %1093 = vmatpush2.msra.mxu0 %v82
    %1094 = vmatprep.mubr.f32.mxu0 %v763
    %1095 = vmatmul.mubr.f32.gmra.mxu0 %v762
    %v1096 = vpop.f32.mrf.mxu0
    %v1097 = vadd.f32 %v1017, %v1096
    %v1098 = vpop.f32.mrf.mxu0
    %1099 = vmatprep.mubr.f32.mxu0 %v779
    %1100 = vmatmul.mubr.f32.gmra.mxu0 %v778
    %v1101 = vpop.f32.mrf.mxu0
    %v1102 = vadd.f32 %v1022, %v1101
    %v1103 = vpop.f32.mrf.mxu0
    %1104 = vmatprep.mubr.f32.mxu0 %v795
    %1105 = vmatmul.mubr.f32.gmra.mxu0 %v794
    %v1106 = vpop.f32.mrf.mxu0
    %v1107 = vadd.f32 %v1027, %v1106
    %v1108 = vpop.f32.mrf.mxu0
    %1109 = vdwg.mxu0
    %1110 = vmatprep.subr.mxu0 0.0
    %1111 = vmatpush1.msra.mxu0 %v113
    %1112 = vmatprep.subr.mxu0 0.0
    %1113 = vmatpush1.msra.mxu0 %v112
    %1114 = vmatprep.subr.mxu0 0.0
    %1115 = vmatpush1.msra.mxu0 %v111
    %1116 = vmatprep.subr.mxu0 0.0
    %1117 = vmatpush1.msra.mxu0 %v110
    %1118 = vmatprep.subr.mxu0 0.0
    %1119 = vmatpush1.msra.mxu0 %v109
    %1120 = vmatprep.subr.mxu0 0.0
    %1121 = vmatpush1.msra.mxu0 %v108
    %1122 = vmatprep.subr.mxu0 0.0
    %1123 = vmatpush1.msra.mxu0 %v107
    %1124 = vmatprep.subr.mxu0 0.0
    %1125 = vmatpush1.msra.mxu0 %v106
    %1126 = vmatprep.subr.mxu0 0.0
    %1127 = vmatpush1.msra.mxu0 %v105
    %1128 = vmatprep.subr.mxu0 0.0
    %1129 = vmatpush1.msra.mxu0 %v104
    %1130 = vmatprep.subr.mxu0 0.0
    %1131 = vmatpush1.msra.mxu0 %v103
    %1132 = vmatprep.subr.mxu0 0.0
    %1133 = vmatpush1.msra.mxu0 %v102
    %1134 = vmatprep.subr.mxu0 0.0
    %1135 = vmatpush1.msra.mxu0 %v101
    %1136 = vmatprep.subr.mxu0 0.0
    %1137 = vmatpush1.msra.mxu0 %v100
    %1138 = vmatprep.subr.mxu0 0.0
    %1139 = vmatpush1.msra.mxu0 %v99
    %1140 = vmatprep.subr.mxu0 0.0
    %1141 = vmatpush1.msra.mxu0 %v98
    %1142 = vmatprep.subr.mxu0 0.0
    %1143 = vmatpush2.msra.mxu0 %v129
    %1144 = vmatprep.subr.mxu0 0.0
    %1145 = vmatpush2.msra.mxu0 %v128
    %1146 = vmatprep.subr.mxu0 0.0
    %1147 = vmatpush2.msra.mxu0 %v127
    %1148 = vmatprep.subr.mxu0 0.0
    %1149 = vmatpush2.msra.mxu0 %v126
    %1150 = vmatprep.subr.mxu0 0.0
    %1151 = vmatpush2.msra.mxu0 %v125
    %1152 = vmatprep.subr.mxu0 0.0
    %1153 = vmatpush2.msra.mxu0 %v124
    %1154 = vmatprep.subr.mxu0 0.0
    %1155 = vmatpush2.msra.mxu0 %v123
    %1156 = vmatprep.subr.mxu0 0.0
    %1157 = vmatpush2.msra.mxu0 %v122
    %1158 = vmatprep.subr.mxu0 0.0
    %1159 = vmatpush2.msra.mxu0 %v121
    %1160 = vmatprep.subr.mxu0 0.0
    %1161 = vmatpush2.msra.mxu0 %v120
    %1162 = vmatprep.subr.mxu0 0.0
    %1163 = vmatpush2.msra.mxu0 %v119
    %1164 = vmatprep.subr.mxu0 0.0
    %1165 = vmatpush2.msra.mxu0 %v118
    %1166 = vmatprep.subr.mxu0 0.0
    %1167 = vmatpush2.msra.mxu0 %v117
    %1168 = vmatprep.subr.mxu0 0.0
    %1169 = vmatpush2.msra.mxu0 %v116
    %1170 = vmatprep.subr.mxu0 0.0
    %1171 = vmatpush2.msra.mxu0 %v115
    %1172 = vmatprep.subr.mxu0 0.0
    %1173 = vmatpush2.msra.mxu0 %v114
    %1174 = vmatprep.mubr.f32.mxu0 %v765
    %1175 = vmatmul.mubr.f32.gmra.mxu0 %v764
    %v1176 = vpop.f32.mrf.mxu0
    %v1177 = vadd.f32 %v1097, %v1176
    %v1178 = vpop.f32.mrf.mxu0
    %1179 = vmatprep.mubr.f32.mxu0 %v781
    %1180 = vmatmul.mubr.f32.gmra.mxu0 %v780
    %v1181 = vpop.f32.mrf.mxu0
    %v1182 = vadd.f32 %v1102, %v1181
    %v1183 = vpop.f32.mrf.mxu0
    %1184 = vmatprep.mubr.f32.mxu0 %v797
    %1185 = vmatmul.mubr.f32.gmra.mxu0 %v796
    %v1186 = vpop.f32.mrf.mxu0
    %v1187 = vadd.f32 %v1107, %v1186
    %v1188 = vpop.f32.mrf.mxu0
    %1189 = vdwg.mxu0
    %1190 = vmatprep.subr.mxu0 0.0
    %1191 = vmatpush1.msra.mxu0 %v145
    %1192 = vmatprep.subr.mxu0 0.0
    %1193 = vmatpush1.msra.mxu0 %v144
    %1194 = vmatprep.subr.mxu0 0.0
    %1195 = vmatpush1.msra.mxu0 %v143
    %1196 = vmatprep.subr.mxu0 0.0
    %1197 = vmatpush1.msra.mxu0 %v142
    %1198 = vmatprep.subr.mxu0 0.0
    %1199 = vmatpush1.msra.mxu0 %v141
    %1200 = vmatprep.subr.mxu0 0.0
    %1201 = vmatpush1.msra.mxu0 %v140
    %1202 = vmatprep.subr.mxu0 0.0
    %1203 = vmatpush1.msra.mxu0 %v139
    %1204 = vmatprep.subr.mxu0 0.0
    %1205 = vmatpush1.msra.mxu0 %v138
    %1206 = vmatprep.subr.mxu0 0.0
    %1207 = vmatpush1.msra.mxu0 %v137
    %1208 = vmatprep.subr.mxu0 0.0
    %1209 = vmatpush1.msra.mxu0 %v136
    %1210 = vmatprep.subr.mxu0 0.0
    %1211 = vmatpush1.msra.mxu0 %v135
    %1212 = vmatprep.subr.mxu0 0.0
    %1213 = vmatpush1.msra.mxu0 %v134
    %1214 = vmatprep.subr.mxu0 0.0
    %1215 = vmatpush1.msra.mxu0 %v133
    %1216 = vmatprep.subr.mxu0 0.0
    %1217 = vmatpush1.msra.mxu0 %v132
    %1218 = vmatprep.subr.mxu0 0.0
    %1219 = vmatpush1.msra.mxu0 %v131
    %1220 = vmatprep.subr.mxu0 0.0
    %1221 = vmatpush1.msra.mxu0 %v130
    %1222 = vmatprep.subr.mxu0 0.0
    %1223 = vmatpush2.msra.mxu0 %v161
    %1224 = vmatprep.subr.mxu0 0.0
    %1225 = vmatpush2.msra.mxu0 %v160
    %1226 = vmatprep.subr.mxu0 0.0
    %1227 = vmatpush2.msra.mxu0 %v159
    %1228 = vmatprep.subr.mxu0 0.0
    %1229 = vmatpush2.msra.mxu0 %v158
    %1230 = vmatprep.subr.mxu0 0.0
    %1231 = vmatpush2.msra.mxu0 %v157
    %1232 = vmatprep.subr.mxu0 0.0
    %1233 = vmatpush2.msra.mxu0 %v156
    %1234 = vmatprep.subr.mxu0 0.0
    %1235 = vmatpush2.msra.mxu0 %v155
    %1236 = vmatprep.subr.mxu0 0.0
    %1237 = vmatpush2.msra.mxu0 %v154
    %1238 = vmatprep.subr.mxu0 0.0
    %1239 = vmatpush2.msra.mxu0 %v153
    %1240 = vmatprep.subr.mxu0 0.0
    %1241 = vmatpush2.msra.mxu0 %v152
    %1242 = vmatprep.subr.mxu0 0.0
    %1243 = vmatpush2.msra.mxu0 %v151
    %1244 = vmatprep.subr.mxu0 0.0
    %1245 = vmatpush2.msra.mxu0 %v150
    %1246 = vmatprep.subr.mxu0 0.0
    %1247 = vmatpush2.msra.mxu0 %v149
    %1248 = vmatprep.subr.mxu0 0.0
    %1249 = vmatpush2.msra.mxu0 %v148
    %1250 = vmatprep.subr.mxu0 0.0
    %1251 = vmatpush2.msra.mxu0 %v147
    %1252 = vmatprep.subr.mxu0 0.0
    %1253 = vmatpush2.msra.mxu0 %v146
    %1254 = vmatprep.mubr.f32.mxu0 %v767
    %1255 = vmatmul.mubr.f32.gmra.mxu0 %v766
    %v1256 = vpop.f32.mrf.mxu0
    %v1257 = vadd.f32 %v1177, %v1256
    %v1258 = vpop.f32.mrf.mxu0
    %1259 = vmatprep.mubr.f32.mxu0 %v783
    %1260 = vmatmul.mubr.f32.gmra.mxu0 %v782
    %v1261 = vpop.f32.mrf.mxu0
    %v1262 = vadd.f32 %v1182, %v1261
    %v1263 = vpop.f32.mrf.mxu0
    %1264 = vmatprep.mubr.f32.mxu0 %v799
    %1265 = vmatmul.mubr.f32.gmra.mxu0 %v798
    %v1266 = vpop.f32.mrf.mxu0
    %v1267 = vadd.f32 %v1187, %v1266
    %v1268 = vpop.f32.mrf.mxu0
    %1269 = vdwg.mxu0
    %1270 = vmatprep.subr.mxu0 0.0
    %1271 = vmatpush1.msra.mxu0 %v177
    %1272 = vmatprep.subr.mxu0 0.0
    %1273 = vmatpush1.msra.mxu0 %v176
    %1274 = vmatprep.subr.mxu0 0.0
    %1275 = vmatpush1.msra.mxu0 %v175
    %1276 = vmatprep.subr.mxu0 0.0
    %1277 = vmatpush1.msra.mxu0 %v174
    %1278 = vmatprep.subr.mxu0 0.0
    %1279 = vmatpush1.msra.mxu0 %v173
    %1280 = vmatprep.subr.mxu0 0.0
    %1281 = vmatpush1.msra.mxu0 %v172
    %1282 = vmatprep.subr.mxu0 0.0
    %1283 = vmatpush1.msra.mxu0 %v171
    %1284 = vmatprep.subr.mxu0 0.0
    %1285 = vmatpush1.msra.mxu0 %v170
    %1286 = vmatprep.subr.mxu0 0.0
    %1287 = vmatpush1.msra.mxu0 %v169
    %1288 = vmatprep.subr.mxu0 0.0
    %1289 = vmatpush1.msra.mxu0 %v168
    %1290 = vmatprep.subr.mxu0 0.0
    %1291 = vmatpush1.msra.mxu0 %v167
    %1292 = vmatprep.subr.mxu0 0.0
    %1293 = vmatpush1.msra.mxu0 %v166
    %1294 = vmatprep.subr.mxu0 0.0
    %1295 = vmatpush1.msra.mxu0 %v165
    %1296 = vmatprep.subr.mxu0 0.0
    %1297 = vmatpush1.msra.mxu0 %v164
    %1298 = vmatprep.subr.mxu0 0.0
    %1299 = vmatpush1.msra.mxu0 %v163
    %1300 = vmatprep.subr.mxu0 0.0
    %1301 = vmatpush1.msra.mxu0 %v162
    %1302 = vmatprep.subr.mxu0 0.0
    %1303 = vmatpush2.msra.mxu0 %v193
    %1304 = vmatprep.subr.mxu0 0.0
    %1305 = vmatpush2.msra.mxu0 %v192
    %1306 = vmatprep.subr.mxu0 0.0
    %1307 = vmatpush2.msra.mxu0 %v191
    %1308 = vmatprep.subr.mxu0 0.0
    %1309 = vmatpush2.msra.mxu0 %v190
    %1310 = vmatprep.subr.mxu0 0.0
    %1311 = vmatpush2.msra.mxu0 %v189
    %1312 = vmatprep.subr.mxu0 0.0
    %1313 = vmatpush2.msra.mxu0 %v188
    %1314 = vmatprep.subr.mxu0 0.0
    %1315 = vmatpush2.msra.mxu0 %v187
    %1316 = vmatprep.subr.mxu0 0.0
    %1317 = vmatpush2.msra.mxu0 %v186
    %1318 = vmatprep.subr.mxu0 0.0
    %1319 = vmatpush2.msra.mxu0 %v185
    %1320 = vmatprep.subr.mxu0 0.0
    %1321 = vmatpush2.msra.mxu0 %v184
    %1322 = vmatprep.subr.mxu0 0.0
    %1323 = vmatpush2.msra.mxu0 %v183
    %1324 = vmatprep.subr.mxu0 0.0
    %1325 = vmatpush2.msra.mxu0 %v182
    %1326 = vmatprep.subr.mxu0 0.0
    %1327 = vmatpush2.msra.mxu0 %v181
    %1328 = vmatprep.subr.mxu0 0.0
    %1329 = vmatpush2.msra.mxu0 %v180
    %1330 = vmatprep.subr.mxu0 0.0
    %1331 = vmatpush2.msra.mxu0 %v179
    %1332 = vmatprep.subr.mxu0 0.0
    %1333 = vmatpush2.msra.mxu0 %v178
    %1334 = vmatprep.mubr.f32.mxu0 %v769
    %1335 = vmatmul.mubr.f32.gmra.mxu0 %v768
    %v1336 = vpop.f32.mrf.mxu0
    %v1337 = vadd.f32 %v1257, %v1336
    %v1338 = vpop.f32.mrf.mxu0
    %1339 = vmatprep.mubr.f32.mxu0 %v785
    %1340 = vmatmul.mubr.f32.gmra.mxu0 %v784
    %v1341 = vpop.f32.mrf.mxu0
    %v1342 = vadd.f32 %v1262, %v1341
    %v1343 = vpop.f32.mrf.mxu0
    %1344 = vmatprep.mubr.f32.mxu0 %v801
    %1345 = vmatmul.mubr.f32.gmra.mxu0 %v800
    %v1346 = vpop.f32.mrf.mxu0
    %v1347 = vadd.f32 %v1267, %v1346
    %v1348 = vpop.f32.mrf.mxu0
    %1349 = vdwg.mxu0
    %1350 = vmatprep.subr.mxu0 0.0
    %1351 = vmatpush1.msra.mxu0 %v209
    %1352 = vmatprep.subr.mxu0 0.0
    %1353 = vmatpush1.msra.mxu0 %v208
    %1354 = vmatprep.subr.mxu0 0.0
    %1355 = vmatpush1.msra.mxu0 %v207
    %1356 = vmatprep.subr.mxu0 0.0
    %1357 = vmatpush1.msra.mxu0 %v206
    %1358 = vmatprep.subr.mxu0 0.0
    %1359 = vmatpush1.msra.mxu0 %v205
    %1360 = vmatprep.subr.mxu0 0.0
    %1361 = vmatpush1.msra.mxu0 %v204
    %1362 = vmatprep.subr.mxu0 0.0
    %1363 = vmatpush1.msra.mxu0 %v203
    %1364 = vmatprep.subr.mxu0 0.0
    %1365 = vmatpush1.msra.mxu0 %v202
    %1366 = vmatprep.subr.mxu0 0.0
    %1367 = vmatpush1.msra.mxu0 %v201
    %1368 = vmatprep.subr.mxu0 0.0
    %1369 = vmatpush1.msra.mxu0 %v200
    %1370 = vmatprep.subr.mxu0 0.0
    %1371 = vmatpush1.msra.mxu0 %v199
    %1372 = vmatprep.subr.mxu0 0.0
    %1373 = vmatpush1.msra.mxu0 %v198
    %1374 = vmatprep.subr.mxu0 0.0
    %1375 = vmatpush1.msra.mxu0 %v197
    %1376 = vmatprep.subr.mxu0 0.0
    %1377 = vmatpush1.msra.mxu0 %v196
    %1378 = vmatprep.subr.mxu0 0.0
    %1379 = vmatpush1.msra.mxu0 %v195
    %1380 = vmatprep.subr.mxu0 0.0
    %1381 = vmatpush1.msra.mxu0 %v194
    %1382 = vmatprep.subr.mxu0 0.0
    %1383 = vmatpush2.msra.mxu0 %v225
    %1384 = vmatprep.subr.mxu0 0.0
    %1385 = vmatpush2.msra.mxu0 %v224
    %1386 = vmatprep.subr.mxu0 0.0
    %1387 = vmatpush2.msra.mxu0 %v223
    %1388 = vmatprep.subr.mxu0 0.0
    %1389 = vmatpush2.msra.mxu0 %v222
    %1390 = vmatprep.subr.mxu0 0.0
    %1391 = vmatpush2.msra.mxu0 %v221
    %1392 = vmatprep.subr.mxu0 0.0
    %1393 = vmatpush2.msra.mxu0 %v220
    %1394 = vmatprep.subr.mxu0 0.0
    %1395 = vmatpush2.msra.mxu0 %v219
    %1396 = vmatprep.subr.mxu0 0.0
    %1397 = vmatpush2.msra.mxu0 %v218
    %1398 = vmatprep.subr.mxu0 0.0
    %1399 = vmatpush2.msra.mxu0 %v217
    %1400 = vmatprep.subr.mxu0 0.0
    %1401 = vmatpush2.msra.mxu0 %v216
    %1402 = vmatprep.subr.mxu0 0.0
    %1403 = vmatpush2.msra.mxu0 %v215
    %1404 = vmatprep.subr.mxu0 0.0
    %1405 = vmatpush2.msra.mxu0 %v214
    %1406 = vmatprep.subr.mxu0 0.0
    %1407 = vmatpush2.msra.mxu0 %v213
    %1408 = vmatprep.subr.mxu0 0.0
    %1409 = vmatpush2.msra.mxu0 %v212
    %1410 = vmatprep.subr.mxu0 0.0
    %1411 = vmatpush2.msra.mxu0 %v211
    %1412 = vmatprep.subr.mxu0 0.0
    %1413 = vmatpush2.msra.mxu0 %v210
    %1414 = vmatprep.mubr.f32.mxu0 %v771
    %1415 = vmatmul.mubr.f32.gmra.mxu0 %v770
    %v1416 = vpop.f32.mrf.mxu0
    %v1417 = vadd.f32 %v1337, %v1416
    %v1418 = vpop.f32.mrf.mxu0
    %1419 = vmatprep.mubr.f32.mxu0 %v787
    %1420 = vmatmul.mubr.f32.gmra.mxu0 %v786
    %v1421 = vpop.f32.mrf.mxu0
    %v1422 = vadd.f32 %v1342, %v1421
    %v1423 = vpop.f32.mrf.mxu0
    %1424 = vmatprep.mubr.f32.mxu0 %v803
    %1425 = vmatmul.mubr.f32.gmra.mxu0 %v802
    %v1426 = vpop.f32.mrf.mxu0
    %v1427 = vadd.f32 %v1347, %v1426
    %v1428 = vpop.f32.mrf.mxu0
    %1429 = vdwg.mxu0
    %1430 = vmatprep.subr.mxu0 0.0
    %1431 = vmatpush1.msra.mxu0 %v241
    %1432 = vmatprep.subr.mxu0 0.0
    %1433 = vmatpush1.msra.mxu0 %v240
    %1434 = vmatprep.subr.mxu0 0.0
    %1435 = vmatpush1.msra.mxu0 %v239
    %1436 = vmatprep.subr.mxu0 0.0
    %1437 = vmatpush1.msra.mxu0 %v238
    %1438 = vmatprep.subr.mxu0 0.0
    %1439 = vmatpush1.msra.mxu0 %v237
    %1440 = vmatprep.subr.mxu0 0.0
    %1441 = vmatpush1.msra.mxu0 %v236
    %1442 = vmatprep.subr.mxu0 0.0
    %1443 = vmatpush1.msra.mxu0 %v235
    %1444 = vmatprep.subr.mxu0 0.0
    %1445 = vmatpush1.msra.mxu0 %v234
    %1446 = vmatprep.subr.mxu0 0.0
    %1447 = vmatpush1.msra.mxu0 %v233
    %1448 = vmatprep.subr.mxu0 0.0
    %1449 = vmatpush1.msra.mxu0 %v232
    %1450 = vmatprep.subr.mxu0 0.0
    %1451 = vmatpush1.msra.mxu0 %v231
    %1452 = vmatprep.subr.mxu0 0.0
    %1453 = vmatpush1.msra.mxu0 %v230
    %1454 = vmatprep.subr.mxu0 0.0
    %1455 = vmatpush1.msra.mxu0 %v229
    %1456 = vmatprep.subr.mxu0 0.0
    %1457 = vmatpush1.msra.mxu0 %v228
    %1458 = vmatprep.subr.mxu0 0.0
    %1459 = vmatpush1.msra.mxu0 %v227
    %1460 = vmatprep.subr.mxu0 0.0
    %1461 = vmatpush1.msra.mxu0 %v226
    %1462 = vmatprep.subr.mxu0 0.0
    %1463 = vmatpush2.msra.mxu0 %v257
    %1464 = vmatprep.subr.mxu0 0.0
    %1465 = vmatpush2.msra.mxu0 %v256
    %1466 = vmatprep.subr.mxu0 0.0
    %1467 = vmatpush2.msra.mxu0 %v255
    %1468 = vmatprep.subr.mxu0 0.0
    %1469 = vmatpush2.msra.mxu0 %v254
    %1470 = vmatprep.subr.mxu0 0.0
    %1471 = vmatpush2.msra.mxu0 %v253
    %1472 = vmatprep.subr.mxu0 0.0
    %1473 = vmatpush2.msra.mxu0 %v252
    %1474 = vmatprep.subr.mxu0 0.0
    %1475 = vmatpush2.msra.mxu0 %v251
    %1476 = vmatprep.subr.mxu0 0.0
    %1477 = vmatpush2.msra.mxu0 %v250
    %1478 = vmatprep.subr.mxu0 0.0
    %1479 = vmatpush2.msra.mxu0 %v249
    %1480 = vmatprep.subr.mxu0 0.0
    %1481 = vmatpush2.msra.mxu0 %v248
    %1482 = vmatprep.subr.mxu0 0.0
    %1483 = vmatpush2.msra.mxu0 %v247
    %1484 = vmatprep.subr.mxu0 0.0
    %1485 = vmatpush2.msra.mxu0 %v246
    %1486 = vmatprep.subr.mxu0 0.0
    %1487 = vmatpush2.msra.mxu0 %v245
    %1488 = vmatprep.subr.mxu0 0.0
    %1489 = vmatpush2.msra.mxu0 %v244
    %1490 = vmatprep.subr.mxu0 0.0
    %1491 = vmatpush2.msra.mxu0 %v243
    %1492 = vmatprep.subr.mxu0 0.0
    %1493 = vmatpush2.msra.mxu0 %v242
    %1494 = vmatprep.mubr.f32.mxu0 %v773
    %1495 = vmatmul.mubr.f32.gmra.mxu0 %v772
    %v1496 = vpop.f32.mrf.mxu0
    %v1497 = vadd.f32 %v1417, %v1496
    %v1498 = vpop.f32.mrf.mxu0
    %1499 = vmatprep.mubr.f32.mxu0 %v789
    %1500 = vmatmul.mubr.f32.gmra.mxu0 %v788
    %v1501 = vpop.f32.mrf.mxu0
    %v1502 = vadd.f32 %v1422, %v1501
    %v1503 = vpop.f32.mrf.mxu0
    %1504 = vmatprep.mubr.f32.mxu0 %v805
    %1505 = vmatmul.mubr.f32.gmra.mxu0 %v804
    %v1506 = vpop.f32.mrf.mxu0
    %v1507 = vadd.f32 %v1427, %v1506
    %v1508 = vpop.f32.mrf.mxu0
    %1509 = vdwg.mxu0
    %v1510 = vmax.f32 %v1497, 0.0
    %v1511 = vmax.f32 %v1502, 0.0
    %v1512 = vmax.f32 %v1507, 0.0
    %vm1513 = vcmask 654336
    %v1515 = vsel %vm1513, %v1510, 0
    %v1518 = vsel %vm1513, %v1511, 0
    %v1521 = vsel %vm1513, %v1512, 0
    %1523 = vmatprep.subr.mxu0 0.0
    %1524 = vmatpush1.msra.mxu0 0.0
    %1525 = vmatprep.subr.mxu0 0.0
    %1526 = vmatpush1.msra.mxu0 0.0
    %1527 = vmatprep.subr.mxu0 0.0
    %1528 = vmatpush1.msra.mxu0 0.0
    %1529 = vmatprep.subr.mxu0 0.0
    %1530 = vmatpush1.msra.mxu0 0.0
    %1531 = vmatprep.subr.mxu0 0.0
    %1532 = vmatpush1.msra.mxu0 0.0
    %1533 = vmatprep.subr.mxu0 0.0
    %1534 = vmatpush1.msra.mxu0 0.0
    %1535 = vmatprep.subr.mxu0 0.0
    %1536 = vmatpush1.msra.mxu0 %v757
    %1537 = vmatprep.subr.mxu0 0.0
    %1538 = vmatpush1.msra.mxu0 %v756
    %1539 = vmatprep.subr.mxu0 0.0
    %1540 = vmatpush1.msra.mxu0 %v755
    %1541 = vmatprep.subr.mxu0 0.0
    %1542 = vmatpush1.msra.mxu0 %v754
    %1543 = vmatprep.subr.mxu0 0.0
    %1544 = vmatpush1.msra.mxu0 %v753
    %1545 = vmatprep.subr.mxu0 0.0
    %1546 = vmatpush1.msra.mxu0 %v752
    %1547 = vmatprep.subr.mxu0 0.0
    %1548 = vmatpush1.msra.mxu0 %v751
    %1549 = vmatprep.subr.mxu0 0.0
    %1550 = vmatpush1.msra.mxu0 %v750
    %1551 = vmatprep.subr.mxu0 0.0
    %1552 = vmatpush1.msra.mxu0 %v749
    %1553 = vmatprep.subr.mxu0 0.0
    %1554 = vmatpush1.msra.mxu0 %v748
    %1555 = vmatprep.subr.mxu0 0.0
    %1556 = vmatpush2.msra.mxu0 0.0
    %1557 = vmatprep.subr.mxu0 0.0
    %1558 = vmatpush2.msra.mxu0 0.0
    %1559 = vmatprep.subr.mxu0 0.0
    %1560 = vmatpush2.msra.mxu0 0.0
    %1561 = vmatprep.subr.mxu0 0.0
    %1562 = vmatpush2.msra.mxu0 0.0
    %1563 = vmatprep.subr.mxu0 0.0
    %1564 = vmatpush2.msra.mxu0 0.0
    %1565 = vmatprep.subr.mxu0 0.0
    %1566 = vmatpush2.msra.mxu0 0.0
    %1567 = vmatprep.subr.mxu0 0.0
    %1568 = vmatpush2.msra.mxu0 0.0
    %1569 = vmatprep.subr.mxu0 0.0
    %1570 = vmatpush2.msra.mxu0 0.0
    %1571 = vmatprep.subr.mxu0 0.0
    %1572 = vmatpush2.msra.mxu0 0.0
    %1573 = vmatprep.subr.mxu0 0.0
    %1574 = vmatpush2.msra.mxu0 0.0
    %1575 = vmatprep.subr.mxu0 0.0
    %1576 = vmatpush2.msra.mxu0 0.0
    %1577 = vmatprep.subr.mxu0 0.0
    %1578 = vmatpush2.msra.mxu0 0.0
    %1579 = vmatprep.subr.mxu0 0.0
    %1580 = vmatpush2.msra.mxu0 0.0
    %1581 = vmatprep.subr.mxu0 0.0
    %1582 = vmatpush2.msra.mxu0 0.0
    %1583 = vmatprep.subr.mxu0 0.0
    %1584 = vmatpush2.msra.mxu0 0.0
    %1585 = vmatprep.subr.mxu0 0.0
    %1586 = vmatpush2.msra.mxu0 0.0
    %1587 = vmatprep.mubr.f32.mxu0 0.0
    %1588 = vmatmul.mubr.f32.gmra.mxu0 %v1515
    %v1589 = vpop.f32.mrf.mxu0
    %v1590 = vadd.f32 0.0, %v1589
    %v1591 = vpop.f32.mrf.mxu0
    %1592 = vmatprep.mubr.f32.mxu0 0.0
    %1593 = vmatmul.mubr.f32.gmra.mxu0 %v1518
    %v1594 = vpop.f32.mrf.mxu0
    %v1595 = vadd.f32 0.0, %v1594
    %v1596 = vpop.f32.mrf.mxu0
    %1597 = vmatprep.mubr.f32.mxu0 0.0
    %1598 = vmatmul.mubr.f32.gmra.mxu0 %v1521
    %v1599 = vpop.f32.mrf.mxu0
    %v1600 = vadd.f32 0.0, %v1599
    %v1601 = vpop.f32.mrf.mxu0
    %1602 = vdwg.mxu0
    %v1604 = vsel %vm1513, %v745, 0
    %v1607 = vsel %vm1513, %v746, 0
    %v1610 = vsel %vm1513, %v747, 0
    %1612 = vmatprep.subr.mxu0 0.0
    %1613 = vmatpush1.msra.mxu0 0.0
    %1614 = vmatprep.subr.mxu0 0.0
    %1615 = vmatpush1.msra.mxu0 0.0
    %1616 = vmatprep.subr.mxu0 0.0
    %1617 = vmatpush1.msra.mxu0 0.0
    %1618 = vmatprep.subr.mxu0 0.0
    %1619 = vmatpush1.msra.mxu0 0.0
    %1620 = vmatprep.subr.mxu0 0.0
    %1621 = vmatpush1.msra.mxu0 0.0
    %1622 = vmatprep.subr.mxu0 0.0
    %1623 = vmatpush1.msra.mxu0 0.0
    %1624 = vmatprep.subr.mxu0 0.0
    %1625 = vmatpush1.msra.mxu0 %v757
    %1626 = vmatprep.subr.mxu0 0.0
    %1627 = vmatpush1.msra.mxu0 %v756
    %1628 = vmatprep.subr.mxu0 0.0
    %1629 = vmatpush1.msra.mxu0 %v755
    %1630 = vmatprep.subr.mxu0 0.0
    %1631 = vmatpush1.msra.mxu0 %v754
    %1632 = vmatprep.subr.mxu0 0.0
    %1633 = vmatpush1.msra.mxu0 %v753
    %1634 = vmatprep.subr.mxu0 0.0
    %1635 = vmatpush1.msra.mxu0 %v752
    %1636 = vmatprep.subr.mxu0 0.0
    %1637 = vmatpush1.msra.mxu0 %v751
    %1638 = vmatprep.subr.mxu0 0.0
    %1639 = vmatpush1.msra.mxu0 %v750
    %1640 = vmatprep.subr.mxu0 0.0
    %1641 = vmatpush1.msra.mxu0 %v749
    %1642 = vmatprep.subr.mxu0 0.0
    %1643 = vmatpush1.msra.mxu0 %v748
    %1644 = vmatprep.subr.mxu0 0.0
    %1645 = vmatpush2.msra.mxu0 0.0
    %1646 = vmatprep.subr.mxu0 0.0
    %1647 = vmatpush2.msra.mxu0 0.0
    %1648 = vmatprep.subr.mxu0 0.0
    %1649 = vmatpush2.msra.mxu0 0.0
    %1650 = vmatprep.subr.mxu0 0.0
    %1651 = vmatpush2.msra.mxu0 0.0
    %1652 = vmatprep.subr.mxu0 0.0
    %1653 = vmatpush2.msra.mxu0 0.0
    %1654 = vmatprep.subr.mxu0 0.0
    %1655 = vmatpush2.msra.mxu0 0.0
    %1656 = vmatprep.subr.mxu0 0.0
    %1657 = vmatpush2.msra.mxu0 0.0
    %1658 = vmatprep.subr.mxu0 0.0
    %1659 = vmatpush2.msra.mxu0 0.0
    %1660 = vmatprep.subr.mxu0 0.0
    %1661 = vmatpush2.msra.mxu0 0.0
    %1662 = vmatprep.subr.mxu0 0.0
    %1663 = vmatpush2.msra.mxu0 0.0
    %1664 = vmatprep.subr.mxu0 0.0
    %1665 = vmatpush2.msra.mxu0 0.0
    %1666 = vmatprep.subr.mxu0 0.0
    %1667 = vmatpush2.msra.mxu0 0.0
    %1668 = vmatprep.subr.mxu0 0.0
    %1669 = vmatpush2.msra.mxu0 0.0
    %1670 = vmatprep.subr.mxu0 0.0
    %1671 = vmatpush2.msra.mxu0 0.0
    %1672 = vmatprep.subr.mxu0 0.0
    %1673 = vmatpush2.msra.mxu0 0.0
    %1674 = vmatprep.subr.mxu0 0.0
    %1675 = vmatpush2.msra.mxu0 0.0
    %1676 = vmatprep.mubr.f32.mxu0 0.0
    %1677 = vmatmul.mubr.f32.gmra.mxu0 %v1604
    %v1678 = vpop.f32.mrf.mxu0
    %v1679 = vadd.f32 %v1590, %v1678
    %v1680 = vpop.f32.mrf.mxu0
    %1681 = vmatprep.mubr.f32.mxu0 0.0
    %1682 = vmatmul.mubr.f32.gmra.mxu0 %v1607
    %v1683 = vpop.f32.mrf.mxu0
    %v1684 = vadd.f32 %v1595, %v1683
    %v1685 = vpop.f32.mrf.mxu0
    %1686 = vmatprep.mubr.f32.mxu0 0.0
    %1687 = vmatmul.mubr.f32.gmra.mxu0 %v1610
    %v1688 = vpop.f32.mrf.mxu0
    %v1689 = vadd.f32 %v1600, %v1688
    %v1690 = vpop.f32.mrf.mxu0
    %1691 = vdwg.mxu0
    %v1692 = vld [vmem:[%s0 + $0x60] sm:$0xff]
    %v1693 = vld [vmem:[%s0 + $0x68] sm:$0xff]
    %v1694 = vld [vmem:[%s0 + $0x70] sm:$0xff]
    %v1695 = vld [vmem:[%s0 + $0x78] sm:$0xff]
    %v1696 = vld [vmem:[%s0 + $0x80] sm:$0xff]
    %v1697 = vld [vmem:[%s0 + $0x88] sm:$0xff]
    %v1698 = vld [vmem:[%s0 + $0x90] sm:$0xff]
    %v1699 = vld [vmem:[%s0 + $0x98] sm:$0xff]
    %v1700 = vld [vmem:[%s0 + $0xa0] sm:$0xff]
    %v1701 = vld [vmem:[%s0 + $0xa8] sm:$0xff]
    %v1702 = vld [vmem:[%s0 + $0xb0] sm:$0xff]
    %v1703 = vld [vmem:[%s0 + $0xb8] sm:$0xff]
    %v1704 = vld [vmem:[%s0 + $0x120] sm:$0xff]
    %v1705 = vld [vmem:[%s0 + $0x128] sm:$0xff]
    %v1706 = vld [vmem:[%s0 + $0x130] sm:$0xff]
    %v1707 = vld [vmem:[%s0 + $0x138] sm:$0xff]
    %v1708 = vld [vmem:[%s0 + $0x140] sm:$0xff]
    %v1709 = vld [vmem:[%s0 + $0x148] sm:$0xff]
    %v1710 = vld [vmem:[%s0 + $0x150] sm:$0xff]
    %v1711 = vld [vmem:[%s0 + $0x158] sm:$0xff]
    %v1712 = vld [vmem:[%s0 + $0x160] sm:$0xff]
    %v1713 = vld [vmem:[%s0 + $0x168] sm:$0xff]
    %v1714 = vld [vmem:[%s0 + $0x170] sm:$0xff]
    %v1715 = vld [vmem:[%s0 + $0x178] sm:$0xff]
    %v1716 = vld [vmem:[%s0 + $0x1e0] sm:$0xff]
    %v1717 = vld [vmem:[%s0 + $0x1e8] sm:$0xff]
    %v1718 = vld [vmem:[%s0 + $0x1f0] sm:$0xff]
    %v1719 = vld [vmem:[%s0 + $0x1f8] sm:$0xff]
    %v1720 = vld [vmem:[%s0 + $0x200] sm:$0xff]
    %v1721 = vld [vmem:[%s0 + $0x208] sm:$0xff]
    %v1722 = vld [vmem:[%s0 + $0x210] sm:$0xff]
    %v1723 = vld [vmem:[%s0 + $0x218] sm:$0xff]
    %v1724 = vld [vmem:[%s0 + $0x220] sm:$0xff]
    %v1725 = vld [vmem:[%s0 + $0x228] sm:$0xff]
    %v1726 = vld [vmem:[%s0 + $0x230] sm:$0xff]
    %v1727 = vld [vmem:[%s0 + $0x238] sm:$0xff]
    %v1728 = vld [vmem:[%s1] sm:$0xff]
    %v1729 = vld [vmem:[%s1 + $0x8] sm:$0xff]
    %v1730 = vld [vmem:[%s1 + $0x10] sm:$0xff]
    %v1731 = vld [vmem:[%s1 + $0x18] sm:$0xff]
    %v1732 = vld [vmem:[%s1 + $0x20] sm:$0xff]
    %v1733 = vld [vmem:[%s1 + $0x28] sm:$0xff]
    %v1734 = vld [vmem:[%s1 + $0x30] sm:$0xff]
    %v1735 = vld [vmem:[%s1 + $0x38] sm:$0xff]
    %v1736 = vld [vmem:[%s1 + $0x40] sm:$0xff]
    %v1737 = vld [vmem:[%s1 + $0x48] sm:$0xff]
    %v1738 = vld [vmem:[%s1 + $0x50] sm:$0xff]
    %v1739 = vld [vmem:[%s1 + $0x58] sm:$0xff]
    %v1740 = vld [vmem:[%s1 + $0x60] sm:$0xff]
    %v1741 = vld [vmem:[%s1 + $0x68] sm:$0xff]
    %v1742 = vld [vmem:[%s1 + $0x70] sm:$0xff]
    %v1743 = vld [vmem:[%s1 + $0x78] sm:$0xff]
    %v1744 = vld [vmem:[%s1 + $0x80] sm:$0xff]
    %v1745 = vld [vmem:[%s1 + $0x88] sm:$0xff]
    %v1746 = vld [vmem:[%s1 + $0x90] sm:$0xff]
    %v1747 = vld [vmem:[%s1 + $0x98] sm:$0xff]
    %v1748 = vld [vmem:[%s1 + $0xa0] sm:$0xff]
    %v1749 = vld [vmem:[%s1 + $0xa8] sm:$0xff]
    %v1750 = vld [vmem:[%s1 + $0xb0] sm:$0xff]
    %v1751 = vld [vmem:[%s1 + $0xb8] sm:$0xff]
    %v1752 = vld [vmem:[%s1 + $0xc0] sm:$0xff]
    %v1753 = vld [vmem:[%s1 + $0xc8] sm:$0xff]
    %v1754 = vld [vmem:[%s1 + $0xd0] sm:$0xff]
    %v1755 = vld [vmem:[%s1 + $0xd8] sm:$0xff]
    %v1756 = vld [vmem:[%s1 + $0xe0] sm:$0xff]
    %v1757 = vld [vmem:[%s1 + $0xe8] sm:$0xff]
    %v1758 = vld [vmem:[%s1 + $0xf0] sm:$0xff]
    %v1759 = vld [vmem:[%s1 + $0xf8] sm:$0xff]
    %v1760 = vld [vmem:[%s1 + $0x100] sm:$0xff]
    %v1761 = vld [vmem:[%s1 + $0x108] sm:$0xff]
    %v1762 = vld [vmem:[%s1 + $0x110] sm:$0xff]
    %v1763 = vld [vmem:[%s1 + $0x118] sm:$0xff]
    %v1764 = vld [vmem:[%s1 + $0x120] sm:$0xff]
    %v1765 = vld [vmem:[%s1 + $0x128] sm:$0xff]
    %v1766 = vld [vmem:[%s1 + $0x130] sm:$0xff]
    %v1767 = vld [vmem:[%s1 + $0x138] sm:$0xff]
    %v1768 = vld [vmem:[%s1 + $0x140] sm:$0xff]
    %v1769 = vld [vmem:[%s1 + $0x148] sm:$0xff]
    %v1770 = vld [vmem:[%s1 + $0x150] sm:$0xff]
    %v1771 = vld [vmem:[%s1 + $0x158] sm:$0xff]
    %v1772 = vld [vmem:[%s1 + $0x160] sm:$0xff]
    %v1773 = vld [vmem:[%s1 + $0x168] sm:$0xff]
    %v1774 = vld [vmem:[%s1 + $0x170] sm:$0xff]
    %v1775 = vld [vmem:[%s1 + $0x178] sm:$0xff]
    %v1776 = vld [vmem:[%s1 + $0x180] sm:$0xff]
    %v1777 = vld [vmem:[%s1 + $0x188] sm:$0xff]
    %v1778 = vld [vmem:[%s1 + $0x190] sm:$0xff]
    %v1779 = vld [vmem:[%s1 + $0x198] sm:$0xff]
    %v1780 = vld [vmem:[%s1 + $0x1a0] sm:$0xff]
    %v1781 = vld [vmem:[%s1 + $0x1a8] sm:$0xff]
    %v1782 = vld [vmem:[%s1 + $0x1b0] sm:$0xff]
    %v1783 = vld [vmem:[%s1 + $0x1b8] sm:$0xff]
    %v1784 = vld [vmem:[%s1 + $0x1c0] sm:$0xff]
    %v1785 = vld [vmem:[%s1 + $0x1c8] sm:$0xff]
    %v1786 = vld [vmem:[%s1 + $0x1d0] sm:$0xff]
    %v1787 = vld [vmem:[%s1 + $0x1d8] sm:$0xff]
    %v1788 = vld [vmem:[%s1 + $0x1e0] sm:$0xff]
    %v1789 = vld [vmem:[%s1 + $0x1e8] sm:$0xff]
    %v1790 = vld [vmem:[%s1 + $0x1f0] sm:$0xff]
    %v1791 = vld [vmem:[%s1 + $0x1f8] sm:$0xff]
    %v1792 = vld [vmem:[%s1 + $0x200] sm:$0xff]
    %v1793 = vld [vmem:[%s1 + $0x208] sm:$0xff]
    %v1794 = vld [vmem:[%s1 + $0x210] sm:$0xff]
    %v1795 = vld [vmem:[%s1 + $0x218] sm:$0xff]
    %v1796 = vld [vmem:[%s1 + $0x220] sm:$0xff]
    %v1797 = vld [vmem:[%s1 + $0x228] sm:$0xff]
    %v1798 = vld [vmem:[%s1 + $0x230] sm:$0xff]
    %v1799 = vld [vmem:[%s1 + $0x238] sm:$0xff]
    %v1800 = vld [vmem:[%s1 + $0x240] sm:$0xff]
    %v1801 = vld [vmem:[%s1 + $0x248] sm:$0xff]
    %v1802 = vld [vmem:[%s1 + $0x250] sm:$0xff]
    %v1803 = vld [vmem:[%s1 + $0x258] sm:$0xff]
    %v1804 = vld [vmem:[%s1 + $0x260] sm:$0xff]
    %v1805 = vld [vmem:[%s1 + $0x268] sm:$0xff]
    %v1806 = vld [vmem:[%s1 + $0x270] sm:$0xff]
    %v1807 = vld [vmem:[%s1 + $0x278] sm:$0xff]
    %v1808 = vld [vmem:[%s1 + $0x280] sm:$0xff]
    %v1809 = vld [vmem:[%s1 + $0x288] sm:$0xff]
    %v1810 = vld [vmem:[%s1 + $0x290] sm:$0xff]
    %v1811 = vld [vmem:[%s1 + $0x298] sm:$0xff]
    %v1812 = vld [vmem:[%s1 + $0x2a0] sm:$0xff]
    %v1813 = vld [vmem:[%s1 + $0x2a8] sm:$0xff]
    %v1814 = vld [vmem:[%s1 + $0x2b0] sm:$0xff]
    %v1815 = vld [vmem:[%s1 + $0x2b8] sm:$0xff]
    %v1816 = vld [vmem:[%s1 + $0x2c0] sm:$0xff]
    %v1817 = vld [vmem:[%s1 + $0x2c8] sm:$0xff]
    %v1818 = vld [vmem:[%s1 + $0x2d0] sm:$0xff]
    %v1819 = vld [vmem:[%s1 + $0x2d8] sm:$0xff]
    %v1820 = vld [vmem:[%s1 + $0x2e0] sm:$0xff]
    %v1821 = vld [vmem:[%s1 + $0x2e8] sm:$0xff]
    %v1822 = vld [vmem:[%s1 + $0x2f0] sm:$0xff]
    %v1823 = vld [vmem:[%s1 + $0x2f8] sm:$0xff]
    %v1824 = vld [vmem:[%s1 + $0x300] sm:$0xff]
    %v1825 = vld [vmem:[%s1 + $0x308] sm:$0xff]
    %v1826 = vld [vmem:[%s1 + $0x310] sm:$0xff]
    %v1827 = vld [vmem:[%s1 + $0x318] sm:$0xff]
    %v1828 = vld [vmem:[%s1 + $0x320] sm:$0xff]
    %v1829 = vld [vmem:[%s1 + $0x328] sm:$0xff]
    %v1830 = vld [vmem:[%s1 + $0x330] sm:$0xff]
    %v1831 = vld [vmem:[%s1 + $0x338] sm:$0xff]
    %v1832 = vld [vmem:[%s1 + $0x340] sm:$0xff]
    %v1833 = vld [vmem:[%s1 + $0x348] sm:$0xff]
    %v1834 = vld [vmem:[%s1 + $0x350] sm:$0xff]
    %v1835 = vld [vmem:[%s1 + $0x358] sm:$0xff]
    %v1836 = vld [vmem:[%s1 + $0x360] sm:$0xff]
    %v1837 = vld [vmem:[%s1 + $0x368] sm:$0xff]
    %v1838 = vld [vmem:[%s1 + $0x370] sm:$0xff]
    %v1839 = vld [vmem:[%s1 + $0x378] sm:$0xff]
    %v1840 = vld [vmem:[%s1 + $0x380] sm:$0xff]
    %v1841 = vld [vmem:[%s1 + $0x388] sm:$0xff]
    %v1842 = vld [vmem:[%s1 + $0x390] sm:$0xff]
    %v1843 = vld [vmem:[%s1 + $0x398] sm:$0xff]
    %v1844 = vld [vmem:[%s1 + $0x3a0] sm:$0xff]
    %v1845 = vld [vmem:[%s1 + $0x3a8] sm:$0xff]
    %v1846 = vld [vmem:[%s1 + $0x3b0] sm:$0xff]
    %v1847 = vld [vmem:[%s1 + $0x3b8] sm:$0xff]
    %v1848 = vld [vmem:[%s1 + $0x3c0] sm:$0xff]
    %v1849 = vld [vmem:[%s1 + $0x3c8] sm:$0xff]
    %v1850 = vld [vmem:[%s1 + $0x3d0] sm:$0xff]
    %v1851 = vld [vmem:[%s1 + $0x3d8] sm:$0xff]
    %v1852 = vld [vmem:[%s1 + $0x3e0] sm:$0xff]
    %v1853 = vld [vmem:[%s1 + $0x3e8] sm:$0xff]
    %v1854 = vld [vmem:[%s1 + $0x3f0] sm:$0xff]
    %v1855 = vld [vmem:[%s1 + $0x3f8] sm:$0xff]
    %v1856 = vld [vmem:[%s1 + $0x400] sm:$0xff]
    %v1857 = vld [vmem:[%s1 + $0x408] sm:$0xff]
    %v1858 = vld [vmem:[%s1 + $0x410] sm:$0xff]
    %v1859 = vld [vmem:[%s1 + $0x418] sm:$0xff]
    %v1860 = vld [vmem:[%s1 + $0x420] sm:$0xff]
    %v1861 = vld [vmem:[%s1 + $0x428] sm:$0xff]
    %v1862 = vld [vmem:[%s1 + $0x430] sm:$0xff]
    %v1863 = vld [vmem:[%s1 + $0x438] sm:$0xff]
    %v1864 = vld [vmem:[%s1 + $0x440] sm:$0xff]
    %v1865 = vld [vmem:[%s1 + $0x448] sm:$0xff]
    %v1866 = vld [vmem:[%s1 + $0x450] sm:$0xff]
    %v1867 = vld [vmem:[%s1 + $0x458] sm:$0xff]
    %v1868 = vld [vmem:[%s1 + $0x460] sm:$0xff]
    %v1869 = vld [vmem:[%s1 + $0x468] sm:$0xff]
    %v1870 = vld [vmem:[%s1 + $0x470] sm:$0xff]
    %v1871 = vld [vmem:[%s1 + $0x478] sm:$0xff]
    %v1872 = vld [vmem:[%s1 + $0x480] sm:$0xff]
    %v1873 = vld [vmem:[%s1 + $0x488] sm:$0xff]
    %v1874 = vld [vmem:[%s1 + $0x490] sm:$0xff]
    %v1875 = vld [vmem:[%s1 + $0x498] sm:$0xff]
    %v1876 = vld [vmem:[%s1 + $0x4a0] sm:$0xff]
    %v1877 = vld [vmem:[%s1 + $0x4a8] sm:$0xff]
    %v1878 = vld [vmem:[%s1 + $0x4b0] sm:$0xff]
    %v1879 = vld [vmem:[%s1 + $0x4b8] sm:$0xff]
    %v1880 = vld [vmem:[%s1 + $0x4c0] sm:$0xff]
    %v1881 = vld [vmem:[%s1 + $0x4c8] sm:$0xff]
    %v1882 = vld [vmem:[%s1 + $0x4d0] sm:$0xff]
    %v1883 = vld [vmem:[%s1 + $0x4d8] sm:$0xff]
    %v1884 = vld [vmem:[%s1 + $0x4e0] sm:$0xff]
    %v1885 = vld [vmem:[%s1 + $0x4e8] sm:$0xff]
    %v1886 = vld [vmem:[%s1 + $0x4f0] sm:$0xff]
    %v1887 = vld [vmem:[%s1 + $0x4f8] sm:$0xff]
    %v1888 = vld [vmem:[%s1 + $0x500] sm:$0xff]
    %v1889 = vld [vmem:[%s1 + $0x508] sm:$0xff]
    %v1890 = vld [vmem:[%s1 + $0x510] sm:$0xff]
    %v1891 = vld [vmem:[%s1 + $0x518] sm:$0xff]
    %v1892 = vld [vmem:[%s1 + $0x520] sm:$0xff]
    %v1893 = vld [vmem:[%s1 + $0x528] sm:$0xff]
    %v1894 = vld [vmem:[%s1 + $0x530] sm:$0xff]
    %v1895 = vld [vmem:[%s1 + $0x538] sm:$0xff]
    %v1896 = vld [vmem:[%s1 + $0x540] sm:$0xff]
    %v1897 = vld [vmem:[%s1 + $0x548] sm:$0xff]
    %v1898 = vld [vmem:[%s1 + $0x550] sm:$0xff]
    %v1899 = vld [vmem:[%s1 + $0x558] sm:$0xff]
    %v1900 = vld [vmem:[%s1 + $0x560] sm:$0xff]
    %v1901 = vld [vmem:[%s1 + $0x568] sm:$0xff]
    %v1902 = vld [vmem:[%s1 + $0x570] sm:$0xff]
    %v1903 = vld [vmem:[%s1 + $0x578] sm:$0xff]
    %v1904 = vld [vmem:[%s1 + $0x580] sm:$0xff]
    %v1905 = vld [vmem:[%s1 + $0x588] sm:$0xff]
    %v1906 = vld [vmem:[%s1 + $0x590] sm:$0xff]
    %v1907 = vld [vmem:[%s1 + $0x598] sm:$0xff]
    %v1908 = vld [vmem:[%s1 + $0x5a0] sm:$0xff]
    %v1909 = vld [vmem:[%s1 + $0x5a8] sm:$0xff]
    %v1910 = vld [vmem:[%s1 + $0x5b0] sm:$0xff]
    %v1911 = vld [vmem:[%s1 + $0x5b8] sm:$0xff]
    %v1912 = vld [vmem:[%s1 + $0x5c0] sm:$0xff]
    %v1913 = vld [vmem:[%s1 + $0x5c8] sm:$0xff]
    %v1914 = vld [vmem:[%s1 + $0x5d0] sm:$0xff]
    %v1915 = vld [vmem:[%s1 + $0x5d8] sm:$0xff]
    %v1916 = vld [vmem:[%s1 + $0x5e0] sm:$0xff]
    %v1917 = vld [vmem:[%s1 + $0x5e8] sm:$0xff]
    %v1918 = vld [vmem:[%s1 + $0x5f0] sm:$0xff]
    %v1919 = vld [vmem:[%s1 + $0x5f8] sm:$0xff]
    %1920 = vmatprep.subr.mxu0 0.0
    %1921 = vmatpush1.msra.mxu0 %v1743
    %1922 = vmatprep.subr.mxu0 0.0
    %1923 = vmatpush1.msra.mxu0 %v1742
    %1924 = vmatprep.subr.mxu0 0.0
    %1925 = vmatpush1.msra.mxu0 %v1741
    %1926 = vmatprep.subr.mxu0 0.0
    %1927 = vmatpush1.msra.mxu0 %v1740
    %1928 = vmatprep.subr.mxu0 0.0
    %1929 = vmatpush1.msra.mxu0 %v1739
    %1930 = vmatprep.subr.mxu0 0.0
    %1931 = vmatpush1.msra.mxu0 %v1738
    %1932 = vmatprep.subr.mxu0 0.0
    %1933 = vmatpush1.msra.mxu0 %v1737
    %1934 = vmatprep.subr.mxu0 0.0
    %1935 = vmatpush1.msra.mxu0 %v1736
    %1936 = vmatprep.subr.mxu0 0.0
    %1937 = vmatpush1.msra.mxu0 %v1735
    %1938 = vmatprep.subr.mxu0 0.0
    %1939 = vmatpush1.msra.mxu0 %v1734
    %1940 = vmatprep.subr.mxu0 0.0
    %1941 = vmatpush1.msra.mxu0 %v1733
    %1942 = vmatprep.subr.mxu0 0.0
    %1943 = vmatpush1.msra.mxu0 %v1732
    %1944 = vmatprep.subr.mxu0 0.0
    %1945 = vmatpush1.msra.mxu0 %v1731
    %1946 = vmatprep.subr.mxu0 0.0
    %1947 = vmatpush1.msra.mxu0 %v1730
    %1948 = vmatprep.subr.mxu0 0.0
    %1949 = vmatpush1.msra.mxu0 %v1729
    %1950 = vmatprep.subr.mxu0 0.0
    %1951 = vmatpush1.msra.mxu0 %v1728
    %1952 = vmatprep.subr.mxu0 0.0
    %1953 = vmatpush2.msra.mxu0 %v1759
    %1954 = vmatprep.subr.mxu0 0.0
    %1955 = vmatpush2.msra.mxu0 %v1758
    %1956 = vmatprep.subr.mxu0 0.0
    %1957 = vmatpush2.msra.mxu0 %v1757
    %1958 = vmatprep.subr.mxu0 0.0
    %1959 = vmatpush2.msra.mxu0 %v1756
    %1960 = vmatprep.subr.mxu0 0.0
    %1961 = vmatpush2.msra.mxu0 %v1755
    %1962 = vmatprep.subr.mxu0 0.0
    %1963 = vmatpush2.msra.mxu0 %v1754
    %1964 = vmatprep.subr.mxu0 0.0
    %1965 = vmatpush2.msra.mxu0 %v1753
    %1966 = vmatprep.subr.mxu0 0.0
    %1967 = vmatpush2.msra.mxu0 %v1752
    %1968 = vmatprep.subr.mxu0 0.0
    %1969 = vmatpush2.msra.mxu0 %v1751
    %1970 = vmatprep.subr.mxu0 0.0
    %1971 = vmatpush2.msra.mxu0 %v1750
    %1972 = vmatprep.subr.mxu0 0.0
    %1973 = vmatpush2.msra.mxu0 %v1749
    %1974 = vmatprep.subr.mxu0 0.0
    %1975 = vmatpush2.msra.mxu0 %v1748
    %1976 = vmatprep.subr.mxu0 0.0
    %1977 = vmatpush2.msra.mxu0 %v1747
    %1978 = vmatprep.subr.mxu0 0.0
    %1979 = vmatpush2.msra.mxu0 %v1746
    %1980 = vmatprep.subr.mxu0 0.0
    %1981 = vmatpush2.msra.mxu0 %v1745
    %1982 = vmatprep.subr.mxu0 0.0
    %1983 = vmatpush2.msra.mxu0 %v1744
    %1984 = vmatprep.mubr.f32.mxu0 %v1693
    %1985 = vmatmul.mubr.f32.gmra.mxu0 %v1692
    %v1986 = vpop.f32.mrf.mxu0
    %v1987 = vadd.f32 %v263, %v1986
    %v1988 = vpop.f32.mrf.mxu0
    %1989 = vmatprep.mubr.f32.mxu0 %v1705
    %1990 = vmatmul.mubr.f32.gmra.mxu0 %v1704
    %v1991 = vpop.f32.mrf.mxu0
    %v1992 = vadd.f32 %v263, %v1991
    %v1993 = vpop.f32.mrf.mxu0
    %1994 = vmatprep.mubr.f32.mxu0 %v1717
    %1995 = vmatmul.mubr.f32.gmra.mxu0 %v1716
    %v1996 = vpop.f32.mrf.mxu0
    %v1997 = vadd.f32 %v263, %v1996
    %v1998 = vpop.f32.mrf.mxu0
    %1999 = vdwg.mxu0
    %2000 = vmatprep.subr.mxu0 0.0
    %2001 = vmatpush1.msra.mxu0 %v1775
    %2002 = vmatprep.subr.mxu0 0.0
    %2003 = vmatpush1.msra.mxu0 %v1774
    %2004 = vmatprep.subr.mxu0 0.0
    %2005 = vmatpush1.msra.mxu0 %v1773
    %2006 = vmatprep.subr.mxu0 0.0
    %2007 = vmatpush1.msra.mxu0 %v1772
    %2008 = vmatprep.subr.mxu0 0.0
    %2009 = vmatpush1.msra.mxu0 %v1771
    %2010 = vmatprep.subr.mxu0 0.0
    %2011 = vmatpush1.msra.mxu0 %v1770
    %2012 = vmatprep.subr.mxu0 0.0
    %2013 = vmatpush1.msra.mxu0 %v1769
    %2014 = vmatprep.subr.mxu0 0.0
    %2015 = vmatpush1.msra.mxu0 %v1768
    %2016 = vmatprep.subr.mxu0 0.0
    %2017 = vmatpush1.msra.mxu0 %v1767
    %2018 = vmatprep.subr.mxu0 0.0
    %2019 = vmatpush1.msra.mxu0 %v1766
    %2020 = vmatprep.subr.mxu0 0.0
    %2021 = vmatpush1.msra.mxu0 %v1765
    %2022 = vmatprep.subr.mxu0 0.0
    %2023 = vmatpush1.msra.mxu0 %v1764
    %2024 = vmatprep.subr.mxu0 0.0
    %2025 = vmatpush1.msra.mxu0 %v1763
    %2026 = vmatprep.subr.mxu0 0.0
    %2027 = vmatpush1.msra.mxu0 %v1762
    %2028 = vmatprep.subr.mxu0 0.0
    %2029 = vmatpush1.msra.mxu0 %v1761
    %2030 = vmatprep.subr.mxu0 0.0
    %2031 = vmatpush1.msra.mxu0 %v1760
    %2032 = vmatprep.subr.mxu0 0.0
    %2033 = vmatpush2.msra.mxu0 %v1791
    %2034 = vmatprep.subr.mxu0 0.0
    %2035 = vmatpush2.msra.mxu0 %v1790
    %2036 = vmatprep.subr.mxu0 0.0
    %2037 = vmatpush2.msra.mxu0 %v1789
    %2038 = vmatprep.subr.mxu0 0.0
    %2039 = vmatpush2.msra.mxu0 %v1788
    %2040 = vmatprep.subr.mxu0 0.0
    %2041 = vmatpush2.msra.mxu0 %v1787
    %2042 = vmatprep.subr.mxu0 0.0
    %2043 = vmatpush2.msra.mxu0 %v1786
    %2044 = vmatprep.subr.mxu0 0.0
    %2045 = vmatpush2.msra.mxu0 %v1785
    %2046 = vmatprep.subr.mxu0 0.0
    %2047 = vmatpush2.msra.mxu0 %v1784
    %2048 = vmatprep.subr.mxu0 0.0
    %2049 = vmatpush2.msra.mxu0 %v1783
    %2050 = vmatprep.subr.mxu0 0.0
    %2051 = vmatpush2.msra.mxu0 %v1782
    %2052 = vmatprep.subr.mxu0 0.0
    %2053 = vmatpush2.msra.mxu0 %v1781
    %2054 = vmatprep.subr.mxu0 0.0
    %2055 = vmatpush2.msra.mxu0 %v1780
    %2056 = vmatprep.subr.mxu0 0.0
    %2057 = vmatpush2.msra.mxu0 %v1779
    %2058 = vmatprep.subr.mxu0 0.0
    %2059 = vmatpush2.msra.mxu0 %v1778
    %2060 = vmatprep.subr.mxu0 0.0
    %2061 = vmatpush2.msra.mxu0 %v1777
    %2062 = vmatprep.subr.mxu0 0.0
    %2063 = vmatpush2.msra.mxu0 %v1776
    %2064 = vmatprep.mubr.f32.mxu0 %v1695
    %2065 = vmatmul.mubr.f32.gmra.mxu0 %v1694
    %v2066 = vpop.f32.mrf.mxu0
    %v2067 = vadd.f32 %v1987, %v2066
    %v2068 = vpop.f32.mrf.mxu0
    %2069 = vmatprep.mubr.f32.mxu0 %v1707
    %2070 = vmatmul.mubr.f32.gmra.mxu0 %v1706
    %v2071 = vpop.f32.mrf.mxu0
    %v2072 = vadd.f32 %v1992, %v2071
    %v2073 = vpop.f32.mrf.mxu0
    %2074 = vmatprep.mubr.f32.mxu0 %v1719
    %2075 = vmatmul.mubr.f32.gmra.mxu0 %v1718
    %v2076 = vpop.f32.mrf.mxu0
    %v2077 = vadd.f32 %v1997, %v2076
    %v2078 = vpop.f32.mrf.mxu0
    %2079 = vdwg.mxu0
    %2080 = vmatprep.subr.mxu0 0.0
    %2081 = vmatpush1.msra.mxu0 %v1807
    %2082 = vmatprep.subr.mxu0 0.0
    %2083 = vmatpush1.msra.mxu0 %v1806
    %2084 = vmatprep.subr.mxu0 0.0
    %2085 = vmatpush1.msra.mxu0 %v1805
    %2086 = vmatprep.subr.mxu0 0.0
    %2087 = vmatpush1.msra.mxu0 %v1804
    %2088 = vmatprep.subr.mxu0 0.0
    %2089 = vmatpush1.msra.mxu0 %v1803
    %2090 = vmatprep.subr.mxu0 0.0
    %2091 = vmatpush1.msra.mxu0 %v1802
    %2092 = vmatprep.subr.mxu0 0.0
    %2093 = vmatpush1.msra.mxu0 %v1801
    %2094 = vmatprep.subr.mxu0 0.0
    %2095 = vmatpush1.msra.mxu0 %v1800
    %2096 = vmatprep.subr.mxu0 0.0
    %2097 = vmatpush1.msra.mxu0 %v1799
    %2098 = vmatprep.subr.mxu0 0.0
    %2099 = vmatpush1.msra.mxu0 %v1798
    %2100 = vmatprep.subr.mxu0 0.0
    %2101 = vmatpush1.msra.mxu0 %v1797
    %2102 = vmatprep.subr.mxu0 0.0
    %2103 = vmatpush1.msra.mxu0 %v1796
    %2104 = vmatprep.subr.mxu0 0.0
    %2105 = vmatpush1.msra.mxu0 %v1795
    %2106 = vmatprep.subr.mxu0 0.0
    %2107 = vmatpush1.msra.mxu0 %v1794
    %2108 = vmatprep.subr.mxu0 0.0
    %2109 = vmatpush1.msra.mxu0 %v1793
    %2110 = vmatprep.subr.mxu0 0.0
    %2111 = vmatpush1.msra.mxu0 %v1792
    %2112 = vmatprep.subr.mxu0 0.0
    %2113 = vmatpush2.msra.mxu0 %v1823
    %2114 = vmatprep.subr.mxu0 0.0
    %2115 = vmatpush2.msra.mxu0 %v1822
    %2116 = vmatprep.subr.mxu0 0.0
    %2117 = vmatpush2.msra.mxu0 %v1821
    %2118 = vmatprep.subr.mxu0 0.0
    %2119 = vmatpush2.msra.mxu0 %v1820
    %2120 = vmatprep.subr.mxu0 0.0
    %2121 = vmatpush2.msra.mxu0 %v1819
    %2122 = vmatprep.subr.mxu0 0.0
    %2123 = vmatpush2.msra.mxu0 %v1818
    %2124 = vmatprep.subr.mxu0 0.0
    %2125 = vmatpush2.msra.mxu0 %v1817
    %2126 = vmatprep.subr.mxu0 0.0
    %2127 = vmatpush2.msra.mxu0 %v1816
    %2128 = vmatprep.subr.mxu0 0.0
    %2129 = vmatpush2.msra.mxu0 %v1815
    %2130 = vmatprep.subr.mxu0 0.0
    %2131 = vmatpush2.msra.mxu0 %v1814
    %2132 = vmatprep.subr.mxu0 0.0
    %2133 = vmatpush2.msra.mxu0 %v1813
    %2134 = vmatprep.subr.mxu0 0.0
    %2135 = vmatpush2.msra.mxu0 %v1812
    %2136 = vmatprep.subr.mxu0 0.0
    %2137 = vmatpush2.msra.mxu0 %v1811
    %2138 = vmatprep.subr.mxu0 0.0
    %2139 = vmatpush2.msra.mxu0 %v1810
    %2140 = vmatprep.subr.mxu0 0.0
    %2141 = vmatpush2.msra.mxu0 %v1809
    %2142 = vmatprep.subr.mxu0 0.0
    %2143 = vmatpush2.msra.mxu0 %v1808
    %2144 = vmatprep.mubr.f32.mxu0 %v1697
    %2145 = vmatmul.mubr.f32.gmra.mxu0 %v1696
    %v2146 = vpop.f32.mrf.mxu0
    %v2147 = vadd.f32 %v2067, %v2146
    %v2148 = vpop.f32.mrf.mxu0
    %2149 = vmatprep.mubr.f32.mxu0 %v1709
    %2150 = vmatmul.mubr.f32.gmra.mxu0 %v1708
    %v2151 = vpop.f32.mrf.mxu0
    %v2152 = vadd.f32 %v2072, %v2151
    %v2153 = vpop.f32.mrf.mxu0
    %2154 = vmatprep.mubr.f32.mxu0 %v1721
    %2155 = vmatmul.mubr.f32.gmra.mxu0 %v1720
    %v2156 = vpop.f32.mrf.mxu0
    %v2157 = vadd.f32 %v2077, %v2156
    %v2158 = vpop.f32.mrf.mxu0
    %2159 = vdwg.mxu0
    %2160 = vmatprep.subr.mxu0 0.0
    %2161 = vmatpush1.msra.mxu0 %v1839
    %2162 = vmatprep.subr.mxu0 0.0
    %2163 = vmatpush1.msra.mxu0 %v1838
    %2164 = vmatprep.subr.mxu0 0.0
    %2165 = vmatpush1.msra.mxu0 %v1837
    %2166 = vmatprep.subr.mxu0 0.0
    %2167 = vmatpush1.msra.mxu0 %v1836
    %2168 = vmatprep.subr.mxu0 0.0
    %2169 = vmatpush1.msra.mxu0 %v1835
    %2170 = vmatprep.subr.mxu0 0.0
    %2171 = vmatpush1.msra.mxu0 %v1834
    %2172 = vmatprep.subr.mxu0 0.0
    %2173 = vmatpush1.msra.mxu0 %v1833
    %2174 = vmatprep.subr.mxu0 0.0
    %2175 = vmatpush1.msra.mxu0 %v1832
    %2176 = vmatprep.subr.mxu0 0.0
    %2177 = vmatpush1.msra.mxu0 %v1831
    %2178 = vmatprep.subr.mxu0 0.0
    %2179 = vmatpush1.msra.mxu0 %v1830
    %2180 = vmatprep.subr.mxu0 0.0
    %2181 = vmatpush1.msra.mxu0 %v1829
    %2182 = vmatprep.subr.mxu0 0.0
    %2183 = vmatpush1.msra.mxu0 %v1828
    %2184 = vmatprep.subr.mxu0 0.0
    %2185 = vmatpush1.msra.mxu0 %v1827
    %2186 = vmatprep.subr.mxu0 0.0
    %2187 = vmatpush1.msra.mxu0 %v1826
    %2188 = vmatprep.subr.mxu0 0.0
    %2189 = vmatpush1.msra.mxu0 %v1825
    %2190 = vmatprep.subr.mxu0 0.0
    %2191 = vmatpush1.msra.mxu0 %v1824
    %2192 = vmatprep.subr.mxu0 0.0
    %2193 = vmatpush2.msra.mxu0 %v1855
    %2194 = vmatprep.subr.mxu0 0.0
    %2195 = vmatpush2.msra.mxu0 %v1854
    %2196 = vmatprep.subr.mxu0 0.0
    %2197 = vmatpush2.msra.mxu0 %v1853
    %2198 = vmatprep.subr.mxu0 0.0
    %2199 = vmatpush2.msra.mxu0 %v1852
    %2200 = vmatprep.subr.mxu0 0.0
    %2201 = vmatpush2.msra.mxu0 %v1851
    %2202 = vmatprep.subr.mxu0 0.0
    %2203 = vmatpush2.msra.mxu0 %v1850
    %2204 = vmatprep.subr.mxu0 0.0
    %2205 = vmatpush2.msra.mxu0 %v1849
    %2206 = vmatprep.subr.mxu0 0.0
    %2207 = vmatpush2.msra.mxu0 %v1848
    %2208 = vmatprep.subr.mxu0 0.0
    %2209 = vmatpush2.msra.mxu0 %v1847
    %2210 = vmatprep.subr.mxu0 0.0
    %2211 = vmatpush2.msra.mxu0 %v1846
    %2212 = vmatprep.subr.mxu0 0.0
    %2213 = vmatpush2.msra.mxu0 %v1845
    %2214 = vmatprep.subr.mxu0 0.0
    %2215 = vmatpush2.msra.mxu0 %v1844
    %2216 = vmatprep.subr.mxu0 0.0
    %2217 = vmatpush2.msra.mxu0 %v1843
    %2218 = vmatprep.subr.mxu0 0.0
    %2219 = vmatpush2.msra.mxu0 %v1842
    %2220 = vmatprep.subr.mxu0 0.0
    %2221 = vmatpush2.msra.mxu0 %v1841
    %2222 = vmatprep.subr.mxu0 0.0
    %2223 = vmatpush2.msra.mxu0 %v1840
    %2224 = vmatprep.mubr.f32.mxu0 %v1699
    %2225 = vmatmul.mubr.f32.gmra.mxu0 %v1698
    %v2226 = vpop.f32.mrf.mxu0
    %v2227 = vadd.f32 %v2147, %v2226
    %v2228 = vpop.f32.mrf.mxu0
    %2229 = vmatprep.mubr.f32.mxu0 %v1711
    %2230 = vmatmul.mubr.f32.gmra.mxu0 %v1710
    %v2231 = vpop.f32.mrf.mxu0
    %v2232 = vadd.f32 %v2152, %v2231
    %v2233 = vpop.f32.mrf.mxu0
    %2234 = vmatprep.mubr.f32.mxu0 %v1723
    %2235 = vmatmul.mubr.f32.gmra.mxu0 %v1722
    %v2236 = vpop.f32.mrf.mxu0
    %v2237 = vadd.f32 %v2157, %v2236
    %v2238 = vpop.f32.mrf.mxu0
    %2239 = vdwg.mxu0
    %2240 = vmatprep.subr.mxu0 0.0
    %2241 = vmatpush1.msra.mxu0 %v1871
    %2242 = vmatprep.subr.mxu0 0.0
    %2243 = vmatpush1.msra.mxu0 %v1870
    %2244 = vmatprep.subr.mxu0 0.0
    %2245 = vmatpush1.msra.mxu0 %v1869
    %2246 = vmatprep.subr.mxu0 0.0
    %2247 = vmatpush1.msra.mxu0 %v1868
    %2248 = vmatprep.subr.mxu0 0.0
    %2249 = vmatpush1.msra.mxu0 %v1867
    %2250 = vmatprep.subr.mxu0 0.0
    %2251 = vmatpush1.msra.mxu0 %v1866
    %2252 = vmatprep.subr.mxu0 0.0
    %2253 = vmatpush1.msra.mxu0 %v1865
    %2254 = vmatprep.subr.mxu0 0.0
    %2255 = vmatpush1.msra.mxu0 %v1864
    %2256 = vmatprep.subr.mxu0 0.0
    %2257 = vmatpush1.msra.mxu0 %v1863
    %2258 = vmatprep.subr.mxu0 0.0
    %2259 = vmatpush1.msra.mxu0 %v1862
    %2260 = vmatprep.subr.mxu0 0.0
    %2261 = vmatpush1.msra.mxu0 %v1861
    %2262 = vmatprep.subr.mxu0 0.0
    %2263 = vmatpush1.msra.mxu0 %v1860
    %2264 = vmatprep.subr.mxu0 0.0
    %2265 = vmatpush1.msra.mxu0 %v1859
    %2266 = vmatprep.subr.mxu0 0.0
    %2267 = vmatpush1.msra.mxu0 %v1858
    %2268 = vmatprep.subr.mxu0 0.0
    %2269 = vmatpush1.msra.mxu0 %v1857
    %2270 = vmatprep.subr.mxu0 0.0
    %2271 = vmatpush1.msra.mxu0 %v1856
    %2272 = vmatprep.subr.mxu0 0.0
    %2273 = vmatpush2.msra.mxu0 %v1887
    %2274 = vmatprep.subr.mxu0 0.0
    %2275 = vmatpush2.msra.mxu0 %v1886
    %2276 = vmatprep.subr.mxu0 0.0
    %2277 = vmatpush2.msra.mxu0 %v1885
    %2278 = vmatprep.subr.mxu0 0.0
    %2279 = vmatpush2.msra.mxu0 %v1884
    %2280 = vmatprep.subr.mxu0 0.0
    %2281 = vmatpush2.msra.mxu0 %v1883
    %2282 = vmatprep.subr.mxu0 0.0
    %2283 = vmatpush2.msra.mxu0 %v1882
    %2284 = vmatprep.subr.mxu0 0.0
    %2285 = vmatpush2.msra.mxu0 %v1881
    %2286 = vmatprep.subr.mxu0 0.0
    %2287 = vmatpush2.msra.mxu0 %v1880
    %2288 = vmatprep.subr.mxu0 0.0
    %2289 = vmatpush2.msra.mxu0 %v1879
    %2290 = vmatprep.subr.mxu0 0.0
    %2291 = vmatpush2.msra.mxu0 %v1878
    %2292 = vmatprep.subr.mxu0 0.0
    %2293 = vmatpush2.msra.mxu0 %v1877
    %2294 = vmatprep.subr.mxu0 0.0
    %2295 = vmatpush2.msra.mxu0 %v1876
    %2296 = vmatprep.subr.mxu0 0.0
    %2297 = vmatpush2.msra.mxu0 %v1875
    %2298 = vmatprep.subr.mxu0 0.0
    %2299 = vmatpush2.msra.mxu0 %v1874
    %2300 = vmatprep.subr.mxu0 0.0
    %2301 = vmatpush2.msra.mxu0 %v1873
    %2302 = vmatprep.subr.mxu0 0.0
    %2303 = vmatpush2.msra.mxu0 %v1872
    %2304 = vmatprep.mubr.f32.mxu0 %v1701
    %2305 = vmatmul.mubr.f32.gmra.mxu0 %v1700
    %v2306 = vpop.f32.mrf.mxu0
    %v2307 = vadd.f32 %v2227, %v2306
    %v2308 = vpop.f32.mrf.mxu0
    %2309 = vmatprep.mubr.f32.mxu0 %v1713
    %2310 = vmatmul.mubr.f32.gmra.mxu0 %v1712
    %v2311 = vpop.f32.mrf.mxu0
    %v2312 = vadd.f32 %v2232, %v2311
    %v2313 = vpop.f32.mrf.mxu0
    %2314 = vmatprep.mubr.f32.mxu0 %v1725
    %2315 = vmatmul.mubr.f32.gmra.mxu0 %v1724
    %v2316 = vpop.f32.mrf.mxu0
    %v2317 = vadd.f32 %v2237, %v2316
    %v2318 = vpop.f32.mrf.mxu0
    %2319 = vdwg.mxu0
    %2320 = vmatprep.subr.mxu0 0.0
    %2321 = vmatpush1.msra.mxu0 %v1903
    %2322 = vmatprep.subr.mxu0 0.0
    %2323 = vmatpush1.msra.mxu0 %v1902
    %2324 = vmatprep.subr.mxu0 0.0
    %2325 = vmatpush1.msra.mxu0 %v1901
    %2326 = vmatprep.subr.mxu0 0.0
    %2327 = vmatpush1.msra.mxu0 %v1900
    %2328 = vmatprep.subr.mxu0 0.0
    %2329 = vmatpush1.msra.mxu0 %v1899
    %2330 = vmatprep.subr.mxu0 0.0
    %2331 = vmatpush1.msra.mxu0 %v1898
    %2332 = vmatprep.subr.mxu0 0.0
    %2333 = vmatpush1.msra.mxu0 %v1897
    %2334 = vmatprep.subr.mxu0 0.0
    %2335 = vmatpush1.msra.mxu0 %v1896
    %2336 = vmatprep.subr.mxu0 0.0
    %2337 = vmatpush1.msra.mxu0 %v1895
    %2338 = vmatprep.subr.mxu0 0.0
    %2339 = vmatpush1.msra.mxu0 %v1894
    %2340 = vmatprep.subr.mxu0 0.0
    %2341 = vmatpush1.msra.mxu0 %v1893
    %2342 = vmatprep.subr.mxu0 0.0
    %2343 = vmatpush1.msra.mxu0 %v1892
    %2344 = vmatprep.subr.mxu0 0.0
    %2345 = vmatpush1.msra.mxu0 %v1891
    %2346 = vmatprep.subr.mxu0 0.0
    %2347 = vmatpush1.msra.mxu0 %v1890
    %2348 = vmatprep.subr.mxu0 0.0
    %2349 = vmatpush1.msra.mxu0 %v1889
    %2350 = vmatprep.subr.mxu0 0.0
    %2351 = vmatpush1.msra.mxu0 %v1888
    %2352 = vmatprep.subr.mxu0 0.0
    %2353 = vmatpush2.msra.mxu0 %v1919
    %2354 = vmatprep.subr.mxu0 0.0
    %2355 = vmatpush2.msra.mxu0 %v1918
    %2356 = vmatprep.subr.mxu0 0.0
    %2357 = vmatpush2.msra.mxu0 %v1917
    %2358 = vmatprep.subr.mxu0 0.0
    %2359 = vmatpush2.msra.mxu0 %v1916
    %2360 = vmatprep.subr.mxu0 0.0
    %2361 = vmatpush2.msra.mxu0 %v1915
    %2362 = vmatprep.subr.mxu0 0.0
    %2363 = vmatpush2.msra.mxu0 %v1914
    %2364 = vmatprep.subr.mxu0 0.0
    %2365 = vmatpush2.msra.mxu0 %v1913
    %2366 = vmatprep.subr.mxu0 0.0
    %2367 = vmatpush2.msra.mxu0 %v1912
    %2368 = vmatprep.subr.mxu0 0.0
    %2369 = vmatpush2.msra.mxu0 %v1911
    %2370 = vmatprep.subr.mxu0 0.0
    %2371 = vmatpush2.msra.mxu0 %v1910
    %2372 = vmatprep.subr.mxu0 0.0
    %2373 = vmatpush2.msra.mxu0 %v1909
    %2374 = vmatprep.subr.mxu0 0.0
    %2375 = vmatpush2.msra.mxu0 %v1908
    %2376 = vmatprep.subr.mxu0 0.0
    %2377 = vmatpush2.msra.mxu0 %v1907
    %2378 = vmatprep.subr.mxu0 0.0
    %2379 = vmatpush2.msra.mxu0 %v1906
    %2380 = vmatprep.subr.mxu0 0.0
    %2381 = vmatpush2.msra.mxu0 %v1905
    %2382 = vmatprep.subr.mxu0 0.0
    %2383 = vmatpush2.msra.mxu0 %v1904
    %2384 = vmatprep.mubr.f32.mxu0 %v1703
    %2385 = vmatmul.mubr.f32.gmra.mxu0 %v1702
    %v2386 = vpop.f32.mrf.mxu0
    %v2387 = vadd.f32 %v2307, %v2386
    %v2388 = vpop.f32.mrf.mxu0
    %2389 = vmatprep.mubr.f32.mxu0 %v1715
    %2390 = vmatmul.mubr.f32.gmra.mxu0 %v1714
    %v2391 = vpop.f32.mrf.mxu0
    %v2392 = vadd.f32 %v2312, %v2391
    %v2393 = vpop.f32.mrf.mxu0
    %2394 = vmatprep.mubr.f32.mxu0 %v1727
    %2395 = vmatmul.mubr.f32.gmra.mxu0 %v1726
    %v2396 = vpop.f32.mrf.mxu0
    %v2397 = vadd.f32 %v2317, %v2396
    %v2398 = vpop.f32.mrf.mxu0
    %2399 = vdwg.mxu0
    %v2400 = vmax.f32 %v2387, 0.0
    %v2401 = vmax.f32 %v2392, 0.0
    %v2402 = vmax.f32 %v2397, 0.0
    %v2404 = vsel %vm1513, %v2400, 0
    %v2407 = vsel %vm1513, %v2401, 0
    %v2410 = vsel %vm1513, %v2402, 0
    %2412 = vmatprep.subr.mxu0 0.0
    %2413 = vmatpush1.msra.mxu0 0.0
    %2414 = vmatprep.subr.mxu0 0.0
    %2415 = vmatpush1.msra.mxu0 0.0
    %2416 = vmatprep.subr.mxu0 0.0
    %2417 = vmatpush1.msra.mxu0 0.0
    %2418 = vmatprep.subr.mxu0 0.0
    %2419 = vmatpush1.msra.mxu0 0.0
    %2420 = vmatprep.subr.mxu0 0.0
    %2421 = vmatpush1.msra.mxu0 0.0
    %2422 = vmatprep.subr.mxu0 0.0
    %2423 = vmatpush1.msra.mxu0 0.0
    %2424 = vmatprep.subr.mxu0 0.0
    %2425 = vmatpush1.msra.mxu0 %v757
    %2426 = vmatprep.subr.mxu0 0.0
    %2427 = vmatpush1.msra.mxu0 %v756
    %2428 = vmatprep.subr.mxu0 0.0
    %2429 = vmatpush1.msra.mxu0 %v755
    %2430 = vmatprep.subr.mxu0 0.0
    %2431 = vmatpush1.msra.mxu0 %v754
    %2432 = vmatprep.subr.mxu0 0.0
    %2433 = vmatpush1.msra.mxu0 %v753
    %2434 = vmatprep.subr.mxu0 0.0
    %2435 = vmatpush1.msra.mxu0 %v752
    %2436 = vmatprep.subr.mxu0 0.0
    %2437 = vmatpush1.msra.mxu0 %v751
    %2438 = vmatprep.subr.mxu0 0.0
    %2439 = vmatpush1.msra.mxu0 %v750
    %2440 = vmatprep.subr.mxu0 0.0
    %2441 = vmatpush1.msra.mxu0 %v749
    %2442 = vmatprep.subr.mxu0 0.0
    %2443 = vmatpush1.msra.mxu0 %v748
    %2444 = vmatprep.subr.mxu0 0.0
    %2445 = vmatpush2.msra.mxu0 0.0
    %2446 = vmatprep.subr.mxu0 0.0
    %2447 = vmatpush2.msra.mxu0 0.0
    %2448 = vmatprep.subr.mxu0 0.0
    %2449 = vmatpush2.msra.mxu0 0.0
    %2450 = vmatprep.subr.mxu0 0.0
    %2451 = vmatpush2.msra.mxu0 0.0
    %2452 = vmatprep.subr.mxu0 0.0
    %2453 = vmatpush2.msra.mxu0 0.0
    %2454 = vmatprep.subr.mxu0 0.0
    %2455 = vmatpush2.msra.mxu0 0.0
    %2456 = vmatprep.subr.mxu0 0.0
    %2457 = vmatpush2.msra.mxu0 0.0
    %2458 = vmatprep.subr.mxu0 0.0
    %2459 = vmatpush2.msra.mxu0 0.0
    %2460 = vmatprep.subr.mxu0 0.0
    %2461 = vmatpush2.msra.mxu0 0.0
    %2462 = vmatprep.subr.mxu0 0.0
    %2463 = vmatpush2.msra.mxu0 0.0
    %2464 = vmatprep.subr.mxu0 0.0
    %2465 = vmatpush2.msra.mxu0 0.0
    %2466 = vmatprep.subr.mxu0 0.0
    %2467 = vmatpush2.msra.mxu0 0.0
    %2468 = vmatprep.subr.mxu0 0.0
    %2469 = vmatpush2.msra.mxu0 0.0
    %2470 = vmatprep.subr.mxu0 0.0
    %2471 = vmatpush2.msra.mxu0 0.0
    %2472 = vmatprep.subr.mxu0 0.0
    %2473 = vmatpush2.msra.mxu0 0.0
    %2474 = vmatprep.subr.mxu0 0.0
    %2475 = vmatpush2.msra.mxu0 0.0
    %2476 = vmatprep.mubr.f32.mxu0 0.0
    %2477 = vmatmul.mubr.f32.gmra.mxu0 %v2404
    %v2478 = vpop.f32.mrf.mxu0
    %v2479 = vadd.f32 0.0, %v2478
    %v2480 = vpop.f32.mrf.mxu0
    %2481 = vmatprep.mubr.f32.mxu0 0.0
    %2482 = vmatmul.mubr.f32.gmra.mxu0 %v2407
    %v2483 = vpop.f32.mrf.mxu0
    %v2484 = vadd.f32 0.0, %v2483
    %v2485 = vpop.f32.mrf.mxu0
    %2486 = vmatprep.mubr.f32.mxu0 0.0
    %2487 = vmatmul.mubr.f32.gmra.mxu0 %v2410
    %v2488 = vpop.f32.mrf.mxu0
    %v2489 = vadd.f32 0.0, %v2488
    %v2490 = vpop.f32.mrf.mxu0
    %2491 = vdwg.mxu0
    %v2492 = vadd.f32 %v1679, %v2479
    %v2493 = vadd.f32 %v1684, %v2484
    %v2494 = vadd.f32 %v1689, %v2489
    %v2495 = vld [vmem:[%s4] sm:$0x1f]
    %v2496 = vld [vmem:[%s5] sm:$0x1]
    %v2498 = vlaneseq
    %v2499 = vshrl.u32 %v2498, 7
    %v2500 = vsub.s32 0, %v2499
    %v2501 = vrot.slane %v2496, %v2500
    %vm2503 = vcmask 39936
    %v2505 = vsel %vm2503, %v2492, 0
    %v2508 = vsel %vm2503, %v2493, 0
    %v2511 = vsel %vm2503, %v2494, 0
    %vm2513 = vcmask 1044480
    %v2515 = vsel %vm2513, %v2495, 0
    %2517 = vmatprep.subr.mxu0 0.0
    %2518 = vmatpush1.msra.mxu0 0.0
    %2519 = vmatprep.subr.mxu0 0.0
    %2520 = vmatpush1.msra.mxu0 0.0
    %2521 = vmatprep.subr.mxu0 0.0
    %2522 = vmatpush1.msra.mxu0 0.0
    %2523 = vmatprep.subr.mxu0 0.0
    %2524 = vmatpush1.msra.mxu0 0.0
    %2525 = vmatprep.subr.mxu0 0.0
    %2526 = vmatpush1.msra.mxu0 0.0
    %2527 = vmatprep.subr.mxu0 0.0
    %2528 = vmatpush1.msra.mxu0 0.0
    %2529 = vmatprep.subr.mxu0 0.0
    %2530 = vmatpush1.msra.mxu0 0.0
    %2531 = vmatprep.subr.mxu0 0.0
    %2532 = vmatpush1.msra.mxu0 0.0
    %2533 = vmatprep.subr.mxu0 0.0
    %2534 = vmatpush1.msra.mxu0 0.0
    %2535 = vmatprep.subr.mxu0 0.0
    %2536 = vmatpush1.msra.mxu0 0.0
    %2537 = vmatprep.subr.mxu0 0.0
    %2538 = vmatpush1.msra.mxu0 0.0
    %2539 = vmatprep.subr.mxu0 0.0
    %2540 = vmatpush1.msra.mxu0 0.0
    %2541 = vmatprep.subr.mxu0 0.0
    %2542 = vmatpush1.msra.mxu0 0.0
    %2543 = vmatprep.subr.mxu0 0.0
    %2544 = vmatpush1.msra.mxu0 0.0
    %2545 = vmatprep.subr.mxu0 0.0
    %2546 = vmatpush1.msra.mxu0 0.0
    %2547 = vmatprep.subr.mxu0 0.0
    %2548 = vmatpush1.msra.mxu0 %v2515
    %2549 = vmatprep.subr.mxu0 0.0
    %2550 = vmatpush2.msra.mxu0 0.0
    %2551 = vmatprep.subr.mxu0 0.0
    %2552 = vmatpush2.msra.mxu0 0.0
    %2553 = vmatprep.subr.mxu0 0.0
    %2554 = vmatpush2.msra.mxu0 0.0
    %2555 = vmatprep.subr.mxu0 0.0
    %2556 = vmatpush2.msra.mxu0 0.0
    %2557 = vmatprep.subr.mxu0 0.0
    %2558 = vmatpush2.msra.mxu0 0.0
    %2559 = vmatprep.subr.mxu0 0.0
    %2560 = vmatpush2.msra.mxu0 0.0
    %2561 = vmatprep.subr.mxu0 0.0
    %2562 = vmatpush2.msra.mxu0 0.0
    %2563 = vmatprep.subr.mxu0 0.0
    %2564 = vmatpush2.msra.mxu0 0.0
    %2565 = vmatprep.subr.mxu0 0.0
    %2566 = vmatpush2.msra.mxu0 0.0
    %2567 = vmatprep.subr.mxu0 0.0
    %2568 = vmatpush2.msra.mxu0 0.0
    %2569 = vmatprep.subr.mxu0 0.0
    %2570 = vmatpush2.msra.mxu0 0.0
    %2571 = vmatprep.subr.mxu0 0.0
    %2572 = vmatpush2.msra.mxu0 0.0
    %2573 = vmatprep.subr.mxu0 0.0
    %2574 = vmatpush2.msra.mxu0 0.0
    %2575 = vmatprep.subr.mxu0 0.0
    %2576 = vmatpush2.msra.mxu0 0.0
    %2577 = vmatprep.subr.mxu0 0.0
    %2578 = vmatpush2.msra.mxu0 0.0
    %2579 = vmatprep.subr.mxu0 0.0
    %2580 = vmatpush2.msra.mxu0 0.0
    %2581 = vmatprep.mubr.f32.mxu0 0.0
    %2582 = vmatmul.mubr.f32.gmra.mxu0 %v2505
    %v2583 = vpop.f32.mrf.mxu0
    %v2584 = vadd.f32 %v2501, %v2583
    %v2585 = vpop.f32.mrf.mxu0
    %2586 = vmatprep.mubr.f32.mxu0 0.0
    %2587 = vmatmul.mubr.f32.gmra.mxu0 %v2508
    %v2588 = vpop.f32.mrf.mxu0
    %v2589 = vadd.f32 %v2501, %v2588
    %v2590 = vpop.f32.mrf.mxu0
    %2591 = vmatprep.mubr.f32.mxu0 0.0
    %2592 = vmatmul.mubr.f32.gmra.mxu0 %v2511
    %v2593 = vpop.f32.mrf.mxu0
    %v2594 = vadd.f32 %v2501, %v2593
    %v2595 = vpop.f32.mrf.mxu0
    %2596 = vdwg.mxu0
    %v2597 = vsub.f32 0.0, %v2584
    %v2598 = vsub.f32 0.0, %v2589
    %v2599 = vsub.f32 0.0, %v2594
    %v2600 = vmul.f32 %v2597, 1.442695
    %v2601 = vpow.pop %v2600
    %v2602 = vmul.f32 %v2598, 1.442695
    %v2603 = vpow.pop %v2602
    %v2604 = vmul.f32 %v2599, 1.442695
    %v2605 = vpow.pop %v2604
    %v2606 = vadd.f32 %v2601, 1.0
    %v2607 = vadd.f32 %v2603, 1.0
    %v2608 = vadd.f32 %v2605, 1.0
    %v2609 = vrcp.pop %v2606
    %v2610 = vmul.f32 1.0, %v2609
    %v2611 = vrcp.pop %v2607
    %v2612 = vmul.f32 1.0, %v2611
    %v2613 = vrcp.pop %v2608
    %v2614 = vmul.f32 1.0, %v2613
    %v2615 = vld [vmem:[%s6] sm:$0x1f]
    %v2616 = vld [vmem:[%s7] sm:$0x1]
    %v2618 = vlaneseq
    %v2619 = vshrl.u32 %v2618, 7
    %v2620 = vsub.s32 0, %v2619
    %v2621 = vrot.slane %v2616, %v2620
    %v2624 = vsel %vm2503, %v2610, 0
    %v2627 = vsel %vm2503, %v2612, 0
    %v2630 = vsel %vm2503, %v2614, 0
    %v2633 = vsel %vm2513, %v2615, 0
    %2635 = vmatprep.subr.mxu0 0.0
    %2636 = vmatpush1.msra.mxu0 0.0
    %2637 = vmatprep.subr.mxu0 0.0
    %2638 = vmatpush1.msra.mxu0 0.0
    %2639 = vmatprep.subr.mxu0 0.0
    %2640 = vmatpush1.msra.mxu0 0.0
    %2641 = vmatprep.subr.mxu0 0.0
    %2642 = vmatpush1.msra.mxu0 0.0
    %2643 = vmatprep.subr.mxu0 0.0
    %2644 = vmatpush1.msra.mxu0 0.0
    %2645 = vmatprep.subr.mxu0 0.0
    %2646 = vmatpush1.msra.mxu0 0.0
    %2647 = vmatprep.subr.mxu0 0.0
    %2648 = vmatpush1.msra.mxu0 0.0
    %2649 = vmatprep.subr.mxu0 0.0
    %2650 = vmatpush1.msra.mxu0 0.0
    %2651 = vmatprep.subr.mxu0 0.0
    %2652 = vmatpush1.msra.mxu0 0.0
    %2653 = vmatprep.subr.mxu0 0.0
    %2654 = vmatpush1.msra.mxu0 0.0
    %2655 = vmatprep.subr.mxu0 0.0
    %2656 = vmatpush1.msra.mxu0 0.0
    %2657 = vmatprep.subr.mxu0 0.0
    %2658 = vmatpush1.msra.mxu0 0.0
    %2659 = vmatprep.subr.mxu0 0.0
    %2660 = vmatpush1.msra.mxu0 0.0
    %2661 = vmatprep.subr.mxu0 0.0
    %2662 = vmatpush1.msra.mxu0 0.0
    %2663 = vmatprep.subr.mxu0 0.0
    %2664 = vmatpush1.msra.mxu0 0.0
    %2665 = vmatprep.subr.mxu0 0.0
    %2666 = vmatpush1.msra.mxu0 %v2633
    %2667 = vmatprep.subr.mxu0 0.0
    %2668 = vmatpush2.msra.mxu0 0.0
    %2669 = vmatprep.subr.mxu0 0.0
    %2670 = vmatpush2.msra.mxu0 0.0
    %2671 = vmatprep.subr.mxu0 0.0
    %2672 = vmatpush2.msra.mxu0 0.0
    %2673 = vmatprep.subr.mxu0 0.0
    %2674 = vmatpush2.msra.mxu0 0.0
    %2675 = vmatprep.subr.mxu0 0.0
    %2676 = vmatpush2.msra.mxu0 0.0
    %2677 = vmatprep.subr.mxu0 0.0
    %2678 = vmatpush2.msra.mxu0 0.0
    %2679 = vmatprep.subr.mxu0 0.0
    %2680 = vmatpush2.msra.mxu0 0.0
    %2681 = vmatprep.subr.mxu0 0.0
    %2682 = vmatpush2.msra.mxu0 0.0
    %2683 = vmatprep.subr.mxu0 0.0
    %2684 = vmatpush2.msra.mxu0 0.0
    %2685 = vmatprep.subr.mxu0 0.0
    %2686 = vmatpush2.msra.mxu0 0.0
    %2687 = vmatprep.subr.mxu0 0.0
    %2688 = vmatpush2.msra.mxu0 0.0
    %2689 = vmatprep.subr.mxu0 0.0
    %2690 = vmatpush2.msra.mxu0 0.0
    %2691 = vmatprep.subr.mxu0 0.0
    %2692 = vmatpush2.msra.mxu0 0.0
    %2693 = vmatprep.subr.mxu0 0.0
    %2694 = vmatpush2.msra.mxu0 0.0
    %2695 = vmatprep.subr.mxu0 0.0
    %2696 = vmatpush2.msra.mxu0 0.0
    %2697 = vmatprep.subr.mxu0 0.0
    %2698 = vmatpush2.msra.mxu0 0.0
    %2699 = vmatprep.mubr.f32.mxu0 0.0
    %2700 = vmatmul.mubr.f32.gmra.mxu0 %v2624
    %v2701 = vpop.f32.mrf.mxu0
    %v2702 = vadd.f32 %v2621, %v2701
    %v2703 = vpop.f32.mrf.mxu0
    %2704 = vmatprep.mubr.f32.mxu0 0.0
    %2705 = vmatmul.mubr.f32.gmra.mxu0 %v2627
    %v2706 = vpop.f32.mrf.mxu0
    %v2707 = vadd.f32 %v2621, %v2706
    %v2708 = vpop.f32.mrf.mxu0
    %2709 = vmatprep.mubr.f32.mxu0 0.0
    %2710 = vmatmul.mubr.f32.gmra.mxu0 %v2630
    %v2711 = vpop.f32.mrf.mxu0
    %v2712 = vadd.f32 %v2621, %v2711
    %v2713 = vpop.f32.mrf.mxu0
    %2714 = vdwg.mxu0
    %2715 = vst [vmem:[#allocation2] sm:$0xff] %v2702
    %2716 = vst [vmem:[#allocation2 + $0x8] sm:$0xff] %v2707
    %2717 = vst [vmem:[#allocation2 + $0x10] sm:$0xff] %v2712
    // Predicated region
    $region34: #{tpu_custom_call.1} parent=1 // pred_check
      _
    $region35: #{tpu_custom_call.1} parent=1 // pred_check_branch
      %2719 = sbr.rel (0) target = $region37
    $region36: #{tpu_custom_call.1} parent=1 // pred_region
      %s2721 = ssub.s32 384, 384
      %2722 = vsyncadd [#allocation3], %s2721
      %s2723 = sshll.u32 [#allocation2], 4
      %s2724 = int_to_ptr.vmem [resolvable:$true] %s2723
      %2729 = dma.vmem_to_hbm [thread:$0]  %s2724, 384, %s8, [#allocation3], 128, 128, 8
    $region37: #{tpu_custom_call.1} parent=1 // pred_fallthru
      _
    // Predicated region
    $region38: #{tpu_custom_call.1} parent=1 // pred_check
      _
    $region39: #{tpu_custom_call.1} parent=1 // pred_check_branch
      %2731 = sbr.rel (0) target = $region41
    $region40: #{tpu_custom_call.1} parent=1 // pred_region
      %2732 = dma.done [#allocation3], 384
    $region41: #{tpu_custom_call.1} parent=1 // pred_fallthru
      _
    %2733 = vsyncpa [#allocation3], 1

</llo_original>
